<compile_context>
chip_gen: v7x
topology: tpu7x:2x2x1
jax: 0.10.0
libtpu: 0.0.40
codegen_flags: <defaults>
</compile_context>

<pallas_src>
import numpy as np
import jax
import jax.numpy as jnp
from jax.experimental import pallas as pl
from jax.experimental.pallas import tpu as pltpu

N_FFT = 512
HOP = 256
N_BINS = N_FFT // 2 + 1   # 257
TILE_T_MAX = 512          # frames per grid step (multiple of 128; ~4-5 MiB VMEM total)


def _window_np():
    n = np.arange(N_FFT)
    hann = 0.5 * (1.0 - np.cos(2.0 * np.pi * n / N_FFT))   # torch.hann_window (periodic)
    return np.sqrt(hann)                                    # .pow(0.5)


def _basis_np():
    """irfft basis (backward norm) with synthesis window folded in, plus OLA envelope."""
    n = np.arange(N_FFT)
    k = np.arange(N_BINS)
    window = _window_np()
    ang = 2.0 * np.pi * np.outer(k, n) / N_FFT               # (257, 512)
    wk = np.full((N_BINS, 1), 2.0)
    wk[0, 0] = 1.0
    wk[-1, 0] = 1.0
    Wr = (wk * np.cos(ang) / N_FFT) * window[None, :]         # (257, 512)
    Wi = (-wk * np.sin(ang) / N_FFT) * window[None, :]        # (257, 512)
    env = window[:HOP] ** 2 + window[HOP:] ** 2                # (256,), == 1 for sqrt-hann
    inv_env = 1.0 / env
    return Wr, Wi, inv_env


def _fused_basis_np():
    """(512, 512): rows 0..256 real basis, rows 257..511 imag basis (bins 1..255)."""
    Wr, Wi, inv_env = _basis_np()
    scale = np.concatenate([inv_env, inv_env])[None, :]        # per-sample OLA normalization
    return np.concatenate([Wr, Wi[1:N_BINS - 1]], axis=0) * scale


def _round_up(v, m):
    return ((v + m - 1) // m) * m


def _plan(B, T):
    """Pick (splits S, tile TT, tiles-per-split NTl, frames-per-split Ts, padded T)."""
    S = 2 if (B == 1 and T >= 512) else 1          # keep both v7x TensorCores busy at B==1
    fps = pl.cdiv(T, S)
    TT = min(TILE_T_MAX, _round_up(fps, 128))
    NTl = pl.cdiv(fps, TT)
    Ts = NTl * TT
    if S > 1 and Ts >= T:                          # degenerate split -> don't split
        S = 1
        TT = min(TILE_T_MAX, _round_up(T, 128))
        NTl = pl.cdiv(T, TT)
        Ts = NTl * TT
    return S, TT, NTl, Ts, S * Ts


def _istft_kernel(cin_ref, x_ref, w_ref, out_ref, carry_ref):
    # cin_ref  : (S, 256) f32   precomputed carry-in per split (row 0 = silence)
    # x_ref    : (TT, 512) bf16 [real bins 0..256 | imag bins 1..255] per frame
    # w_ref    : (512, 512) bf16 fused basis
    # out_ref  : (TT, 256) out_dtype  (row r holds waveform segment r-1, lagged)
    # carry_ref: (1, 256) f32 scratch (windowed tail of the previous frame)
    s = pl.program_id(1)
    t = pl.program_id(2)

    @pl.when(t == 0)
    def _():
        carry_ref[...] = cin_ref[pl.ds(s, 1), :]

    # Windowed frame tails first: only one (TT, 256) f32 temp live at a time.
    tails = jnp.dot(x_ref[...], w_ref[:, HOP:], preferred_element_type=jnp.float32)
    prev_tails = pltpu.roll(tails, shift=1, axis=0)                   # XLU sublane rotate
    row0 = jax.lax.broadcasted_iota(jnp.int32, prev_tails.shape, 0) == 0
    prev_tails = jnp.where(row0, carry_ref[...], prev_tails)          # patch row 0 w/ carry
    carry_ref[...] = tails[-1:, :]                                    # carry to next tile

    heads = jnp.dot(x_ref[...], w_ref[:, :HOP], preferred_element_type=jnp.float32)
    # Single full-tile, lane-dense, aligned store.
    out_ref[...] = (heads + prev_tails).astype(out_ref.dtype)


def stft_decoder(wav_stft, *, out_dtype=jnp.float32):
    """wav_stft: complex64 (B, 257, T). Returns waveform (B, (T-1)*256) in out_dtype."""
    B, F, T = wav_stft.shape
    assert F == N_BINS, f"expected {N_BINS} frequency bins, got {F}"
    assert T >= 2, "need at least 2 frames"

    S, TT, NTl, Ts, T_pad = _plan(B, T)

    W_np = _fused_basis_np()
    W = jnp.asarray(W_np, jnp.bfloat16)                               # (512, 512)

    # ---- input glue: ONE fused XLA pass (no separate transpose/cast/pad passes needed by
    # the kernel).  TODO(synk): upstream TF-GridNet deconv can emit this (B, T, 512) bf16
    # layout directly, making the kernel entirely glue-free.
    xr = jnp.real(wav_stft)
    xi = jnp.imag(wav_stft)
    x = jnp.concatenate([xr, xi[:, 1:N_BINS - 1, :]], axis=1)         # (B, 512, T)
    x = jnp.transpose(x, (0, 2, 1)).astype(jnp.bfloat16)              # (B, T, 512)
    if T_pad != T:
        x = jnp.pad(x, ((0, 0), (0, T_pad - T), (0, 0)))

    # ---- tiny per-split carry-in (windowed tail of the frame preceding each split).
    if S > 1:
        bidx = jnp.asarray([s * Ts - 1 for s in range(1, S)], jnp.int32)
        bframes = x[:, bidx, :].astype(jnp.float32)                   # (B, S-1, 512)
        cin_tail = jnp.einsum("bsk,kn->bsn", bframes,
                              jnp.asarray(W_np[:, HOP:], jnp.float32))
        cin = jnp.concatenate([jnp.zeros((B, 1, HOP), jnp.float32), cin_tail], axis=1)
    else:
        cin = jnp.zeros((B, 1, HOP), jnp.float32)                     # (B, S, 256)

    out = pl.pallas_call(
        _istft_kernel,
        out_shape=jax.ShapeDtypeStruct((B, T_pad, HOP), out_dtype),
        grid_spec=pltpu.PrefetchScalarGridSpec(
            num_scalar_prefetch=0,
            grid=(B, S, NTl),
            in_specs=[
                pl.BlockSpec((pl.Squeezed(), S, HOP), lambda b, s, t: (b, 0, 0)),
                pl.BlockSpec((pl.Squeezed(), TT, N_FFT),
                             lambda b, s, t: (b, s * NTl + t, 0)),
                pl.BlockSpec((N_FFT, N_FFT), lambda b, s, t: (0, 0)),
            ],
            out_specs=pl.BlockSpec((pl.Squeezed(), TT, HOP),
                                   lambda b, s, t: (b, s * NTl + t, 0)),
            scratch_shapes=[pltpu.VMEM((1, HOP), jnp.float32)],
        ),
        compiler_params=pltpu.CompilerParams(
            dimension_semantics=("parallel", "parallel", "arbitrary"),
            vmem_limit_bytes=32 * 1024 * 1024,
        ),
    )(cin, x, W)

    # Row r holds waveform segment r-1. The full-array reshape is free (contiguous) and the
    # lag trim is one contiguous slice that a downstream consumer can fuse.
    return out.reshape(B, T_pad * HOP)[:, HOP:T * HOP]


def _reference_istft(wav_stft):
    """Pure-JAX f32 reference (matches torch.istft for these settings)."""
    Wr, Wi, inv_env = _basis_np()
    Wr = jnp.asarray(Wr, jnp.float32)
    Wi = jnp.asarray(Wi, jnp.float32)
    inv_env = jnp.asarray(inv_env[None, :], jnp.float32)
    xr = jnp.transpose(jnp.real(wav_stft), (0, 2, 1)).astype(jnp.float32)
    xi = jnp.transpose(jnp.imag(wav_stft), (0, 2, 1)).astype(jnp.float32)
    frames = jnp.einsum("btf,fn->btn", xr, Wr) + jnp.einsum("btf,fn->btn", xi, Wi)
    seg = (frames[:, :-1, HOP:] + frames[:, 1:, :HOP]) * inv_env[None]
    return seg.reshape(xr.shape[0], -1)


if __name__ == "__main__":
    def run_case(B, T, key):
        kr, ki = jax.random.split(key)
        real = jax.random.normal(kr, (B, N_BINS, T), dtype=jnp.float32)
        imag = jax.random.normal(ki, (B, N_BINS, T), dtype=jnp.float32)
        wav_stft = (real + 1j * imag).astype(jnp.complex64)           # (B, 257, T)
        wav = jax.block_until_ready(stft_decoder(wav_stft))
        ref = jax.block_until_ready(_reference_istft(wav_stft))
        assert wav.shape == (B, (T - 1) * HOP), wav.shape
        err = float(jnp.max(jnp.abs(wav.astype(jnp.float32) - ref)))
        assert err < 2e-2, err

    # Small case (2 utterances, 8 STFT frames -> waveform length 1792).
    run_case(2, 8, jax.random.PRNGKey(0))
    # Single long utterance: exercises the 2-way frame split (both v7x cores) + carry-in.
    run_case(1, 1024, jax.random.PRNGKey(1))

    print("KERNEL_OK")
</pallas_src>

<mosaic_0001>
module attributes {stable_mosaic.version = 11 : i64} {
  func.func @_istft_kernel(%arg0: i32, %arg1: i32, %arg2: i32, %arg3: memref<1x1x256xf32, #tpu.memory_space<vmem>>, %arg4: memref<1x128x512xbf16, #tpu.memory_space<vmem>>, %arg5: memref<512x512xbf16, #tpu.memory_space<vmem>>, %arg6: memref<1x128x256xf32, #tpu.memory_space<vmem>>, %arg7: memref<1x256xf32, #tpu.memory_space<vmem>>) attributes {dimension_semantics = [#tpu.dimension_semantics<parallel>, #tpu.dimension_semantics<parallel>, #tpu.dimension_semantics<arbitrary>], iteration_bounds = array<i64: 2, 1, 1>, scalar_prefetch = 0 : i64, scratch_operands = 1 : i64, tpu.core_type = #tpu.core_type<tc>, window_params = [{transform_indices = @transform_0, window_bounds = array<i64: 1, 1, 256>}, {transform_indices = @transform_1, window_bounds = array<i64: 1, 128, 512>}, {pipeline_mode = #tpu.pipeline_mode<synchronous>, transform_indices = @transform_2, window_bounds = array<i64: 512, 512>}, {transform_indices = @transform_3, window_bounds = array<i64: 1, 128, 256>}]} {
    %c0_i32 = arith.constant 0 : i32
    %0 = arith.cmpi eq, %arg2, %c0_i32 : i32
    %1 = arith.extui %0 : i1 to i32
    %c0_i32_0 = arith.constant 0 : i32
    %2 = arith.cmpi ne, %1, %c0_i32_0 : i32
    scf.if %2 {
      %c0_18 = arith.constant 0 : index
      %25 = arith.index_cast %arg1 : i32 to index
      %c0_19 = arith.constant 0 : index
      %26 = vector.load %arg3[%c0_18, %25, %c0_19] : memref<1x1x256xf32, #tpu.memory_space<vmem>>, vector<1x1x256xf32>
      %27 = vector.shape_cast %26 : vector<1x1x256xf32> to vector<1x256xf32>
      %c0_20 = arith.constant 0 : index
      %c0_21 = arith.constant 0 : index
      %28 = vector.load %arg7[%c0_20, %c0_21] : memref<1x256xf32, #tpu.memory_space<vmem>>, vector<1x256xf32>
      tpu.vector_store %arg7[%c0_20, %c0_21], %27 {strides = array<i32>} : memref<1x256xf32, #tpu.memory_space<vmem>>, vector<1x256xf32>,
    } else {
    }
    %c0 = arith.constant 0 : index
    %c0_1 = arith.constant 0 : index
    %c0_2 = arith.constant 0 : index
    %3 = vector.load %arg4[%c0, %c0_1, %c0_2] : memref<1x128x512xbf16, #tpu.memory_space<vmem>>, vector<1x128x512xbf16>
    %4 = vector.shape_cast %3 : vector<1x128x512xbf16> to vector<128x512xbf16>
    %c0_3 = arith.constant 0 : index
    %c256 = arith.constant 256 : index
    %5 = vector.load %arg5[%c0_3, %c256] : memref<512x512xbf16, #tpu.memory_space<vmem>>, vector<512x256xbf16>
    %cst = arith.constant dense<0.000000e+00> : vector<128x256xf32>
    %6 = tpu.matmul %4, %5, %cst {dimension_numbers = #tpu.dot_dimension_numbers<[1], [0], [0], [1], [0, 0, 1, 1], [], []>} : vector<128x512xbf16>, vector<512x256xbf16>, vector<128x256xf32> -> vector<128x256xf32>
    %c1_i32 = arith.constant 1 : i32
    %7 = tpu.dynamic_rotate %6 by %c1_i32 dim 0 : vector<128x256xf32>, i32 -> vector<128x256xf32>
    %8 = tpu.iota {dimensions = array<i32: 0>} : vector<128x256xi32>
    %c0_i32_4 = arith.constant 0 : i32
    %9 = vector.broadcast %c0_i32_4 : i32 to vector<128x256xi32>
    %10 = arith.cmpi eq, %8, %9 : vector<128x256xi32>
    %c0_5 = arith.constant 0 : index
    %c0_6 = arith.constant 0 : index
    %11 = vector.load %arg7[%c0_5, %c0_6] : memref<1x256xf32, #tpu.memory_space<vmem>>, vector<1x256xf32>
    %12 = vector.shape_cast %11 : vector<1x256xf32> to vector<1x256xf32>
    %13 = vector.broadcast %12 : vector<1x256xf32> to vector<128x256xf32>
    %14 = arith.select %10, %13, %7 : vector<128x256xi1>, vector<128x256xf32>
    %15 = vector.extract_strided_slice %6 {offsets = [127, 0], sizes = [1, 256], strides = [1, 1]} : vector<128x256xf32> to vector<1x256xf32>
    %c0_7 = arith.constant 0 : index
    %c0_8 = arith.constant 0 : index
    %16 = vector.load %arg7[%c0_7, %c0_8] : memref<1x256xf32, #tpu.memory_space<vmem>>, vector<1x256xf32>
    tpu.vector_store %arg7[%c0_7, %c0_8], %15 {strides = array<i32>} : memref<1x256xf32, #tpu.memory_space<vmem>>, vector<1x256xf32>,
    %c0_9 = arith.constant 0 : index
    %c0_10 = arith.constant 0 : index
    %c0_11 = arith.constant 0 : index
    %17 = vector.load %arg4[%c0_9, %c0_10, %c0_11] : memref<1x128x512xbf16, #tpu.memory_space<vmem>>, vector<1x128x512xbf16>
    %18 = vector.shape_cast %17 : vector<1x128x512xbf16> to vector<128x512xbf16>
    %c0_12 = arith.constant 0 : index
    %c0_13 = arith.constant 0 : index
    %19 = vector.load %arg5[%c0_12, %c0_13] : memref<512x512xbf16, #tpu.memory_space<vmem>>, vector<512x256xbf16>
    %cst_14 = arith.constant dense<0.000000e+00> : vector<128x256xf32>
    %20 = tpu.matmul %18, %19, %cst_14 {dimension_numbers = #tpu.dot_dimension_numbers<[1], [0], [0], [1], [0, 0, 1, 1], [], []>} : vector<128x512xbf16>, vector<512x256xbf16>, vector<128x256xf32> -> vector<128x256xf32>
    %21 = arith.addf %20, %14 : vector<128x256xf32>
    %c0_15 = arith.constant 0 : index
    %c0_16 = arith.constant 0 : index
    %c0_17 = arith.constant 0 : index
    %22 = vector.load %arg6[%c0_15, %c0_16, %c0_17] : memref<1x128x256xf32, #tpu.memory_space<vmem>>, vector<1x128x256xf32>
    %23 = vector.shape_cast %22 : vector<1x128x256xf32> to vector<128x256xf32>
    %24 = vector.shape_cast %21 : vector<128x256xf32> to vector<1x128x256xf32>
    tpu.vector_store %arg6[%c0_15, %c0_16, %c0_17], %24 {strides = array<i32>} : memref<1x128x256xf32, #tpu.memory_space<vmem>>, vector<1x128x256xf32>,
    return
  }
  func.func @transform_0(%arg0: i32, %arg1: i32, %arg2: i32) -> (i32, i32, i32) {
    %c0_i32 = arith.constant 0 : i32
    %c0_i32_0 = arith.constant 0 : i32
    %c0_i32_1 = arith.constant 0 : i32
    return %arg0, %c0_i32, %c0_i32_0 : i32, i32, i32
  }
  func.func @transform_1(%arg0: i32, %arg1: i32, %arg2: i32) -> (i32, i32, i32) {
    %c1_i32 = arith.constant 1 : i32
    %0 = arith.muli %arg1, %c1_i32 : i32
    %1 = arith.addi %0, %arg2 : i32
    %c0_i32 = arith.constant 0 : i32
    %c0_i32_0 = arith.constant 0 : i32
    return %arg0, %1, %c0_i32 : i32, i32, i32
  }
  func.func @transform_2(%arg0: i32, %arg1: i32, %arg2: i32) -> (i32, i32) {
    %c0_i32 = arith.constant 0 : i32
    %c0_i32_0 = arith.constant 0 : i32
    %c0_i32_1 = arith.constant 0 : i32
    return %c0_i32, %c0_i32_0 : i32, i32
  }
  func.func @transform_3(%arg0: i32, %arg1: i32, %arg2: i32) -> (i32, i32, i32) {
    %c1_i32 = arith.constant 1 : i32
    %0 = arith.muli %arg1, %c1_i32 : i32
    %1 = arith.addi %0, %arg2 : i32
    %c0_i32 = arith.constant 0 : i32
    %c0_i32_0 = arith.constant 0 : i32
    return %arg0, %1, %c0_i32 : i32, i32, i32
  }
}

</mosaic_0001>

<llo_original>
// kernel: tpu_custom_call.1
$region0: #{tpu_custom_call.1}
  #allocation0 [shape = 'u32[]', space=smem, size = 0x4, offset = 0x4, fixed_abs, tag = 'smem constant byte address 0x4 - core index']
  #allocation1 [shape = 'u32[144,128]{1,0:T(1,128)}', space=vmem, size = 0x12000, scoped, tag = 'internal scratch']
  #allocation2 [shape = 'f32[1,256]{1,0:T(1,128)}', space=vmem, size = 0x400, scoped, tag = 'scratch operand']
  %s0 = inlined_call_operand.hbm [shape: f32[2,1,256], index: 0, kind: input, shape index: {}]
  %s1 = inlined_call_operand.hbm [shape: bf16[2,128,512], index: 1, kind: input, shape index: {}]
  %s2 = inlined_call_operand.hbm [shape: bf16[512,512], index: 2, kind: input, shape index: {}]
  %s3 = inlined_call_operand.hbm [shape: f32[2,128,256], index: 3, kind: output, shape index: {}]
  %s4 = sld [smem:[#allocation0]]
  $region61: #{tpu_custom_call.1} parent=0
    _
  %s6 = ssub.s32 1, %s4
  %s7 = scalar_select 0, %s6, %s4
  $region1: #{tpu_custom_call.1} parent=0
    #allocation3 [shape = 'u8[2048]{0}', space=vmem, size = 0x800, scoped, tag = 'input window, operand 0']
    #allocation4 [shape = 's32[2]{0}', space=sflag, size = 0x8, scoped, tag = 'scoped memory for tpu_custom_call.1']
    #allocation5 [shape = 's32[2]{0}', space=sflag, size = 0x8, scoped, tag = 'scoped memory for tpu_custom_call.1']
    #allocation6 [shape = 'u8[262144]{0}', space=vmem, size = 0x40000, scoped, tag = 'input window, operand 1']
    #allocation7 [shape = 's32[2]{0}', space=sflag, size = 0x8, scoped, tag = 'scoped memory for tpu_custom_call.1']
    #allocation8 [shape = 'u8[524288]{0}', space=vmem, size = 0x80000, scoped, tag = 'input window, operand 2, single buffered']
    #allocation9 [shape = 'u8[262144]{0}', space=vmem, size = 0x40000, scoped, tag = 'output window, operand 0']
    %8 = vsyncpa [#allocation4], 0
    %s9 = scalar_lea.sflag [#allocation4], 1
    %10 = vsyncpa %s9, 0
    %11 = vsyncpa [#allocation7], 0
    %s12 = scalar_lea.sflag [#allocation7], 1
    %13 = vsyncpa %s12, 0
    %14 = vsyncpa [#allocation5], 0
    %s15 = scalar_lea.sflag [#allocation5], 1
    %16 = vsyncpa %s15, 0
    loop: start=0, step=1, limit=4
    $region2: #{tpu_custom_call.1} parent=1 // loop_pre_header
      _
    $region3: #{tpu_custom_call.1} parent=1 // loop_header
      %s18 = sphi 0, %s22
      %p19 = scmp.ge.s32.totalorder %s18, 4
      %s25 = sphi 0, %s44
      %s26 = sphi 0, %s40
      %s27 = sphi 0, %s36
      %s28 = sphi 0, %s25
      %s29 = sphi 0, %s26
      %s30 = sphi 0, %s27
      %s31 = sphi 0, %s28
      %s32 = sphi 0, %s29
      %s33 = sphi 0, %s30
      %s47 = sphi 0, %s49
      %s50 = sphi 0, %s47
      %s51 = sphi 0, %s50
      %s67 = sphi 0, %s51
      %s77 = sphi 0, %s79
      %s80 = sphi 0, %s77
      %s81 = sphi 0, %s80
      %s97 = sphi 0, %s81
      %s101 = sphi 0, %s101
      %s103 = sphi 0, %s101
      %s104 = sphi 0, %s103
      %s118 = sphi 0, %s104
      %s128 = sphi 0, %s130
      %s131 = sphi 0, %s128
      %s132 = sphi 0, %s131
      %s148 = sphi 0, %s132
    $region4: #{tpu_custom_call.1} parent=1 // loop_header_branch
      %21 = sbr.rel (%p19) target = $region8
    $region5: #{tpu_custom_call.1} parent=1 // loop_body
      %s23 = ssub.s32 %s18, 1
      %s24 = ssub.s32 %s18, 2
      %s34 = sadd.s32 1, %s27
      %p35 = scmp.ge.s32.totalorder %s34, 1
      %s36 = scalar_select %p35, 0, %s34
      %s37 = sadd.s32 1, %s26
      %s38 = scalar_select %p35, %s37, %s26
      %p39 = scmp.ge.s32.totalorder %s38, 1
      %s40 = scalar_select %p39, 0, %s38
      %s41 = sadd.s32 1, %s25
      %s42 = scalar_select %p39, %s41, %s25
      %p43 = scmp.ge.s32.totalorder %s42, 2
      %s44 = scalar_select %p43, 0, %s42
      %s45 = ssub.s32 %s25, %s44
      %p46 = scmp.eq.s32.totalorder %s45, 0
      %s48 = sadd.s32 %s47, 1
      %s49 = scalar_select %p46, %s47, %s48
      %p52 = pneg %p46
      %p53 = scmp.eq.s32.totalorder %s18, 1
      %p54 = por %p52, %p53
      %p55 = scmp.ne.s32.totalorder %s47, %s50
      %p56 = scmp.eq.s32.totalorder %s18, 0
      %p57 = por %p55, %p56
      %p58 = scmp.ne.s32.totalorder %s47, %s50
      %p59 = scmp.eq.s32.totalorder %s23, 1
      %p60 = por %p58, %p59
      %p61 = scmp.ne.s32.totalorder %s50, %s51
      %p62 = scmp.eq.s32.totalorder %s23, 0
      %p63 = por %p61, %p62
      %p64 = scmp.ne.s32.totalorder %s50, %s51
      %p65 = scmp.eq.s32.totalorder %s24, 1
      %p66 = por %p64, %p65
      %p68 = scmp.ne.s32.totalorder %s51, %s67
      %p69 = scmp.eq.s32.totalorder %s24, 0
      %p70 = por %p68, %p69
      %s71 = sadd.s32 %s26, %s27
      %s72 = sadd.s32 %s40, %s36
      %s73 = ssub.s32 %s25, %s44
      %s74 = ssub.s32 %s71, %s72
      %s75 = sor.u32 %s73, %s74
      %p76 = scmp.eq.s32.totalorder %s75, 0
      %s78 = sadd.s32 %s77, 1
      %s79 = scalar_select %p76, %s77, %s78
      %p82 = pneg %p76
      %p83 = scmp.eq.s32.totalorder %s18, 1
      %p84 = por %p82, %p83
      %p85 = scmp.ne.s32.totalorder %s77, %s80
      %p86 = scmp.eq.s32.totalorder %s18, 0
      %p87 = por %p85, %p86
      %p88 = scmp.ne.s32.totalorder %s77, %s80
      %p89 = scmp.eq.s32.totalorder %s23, 1
      %p90 = por %p88, %p89
      %p91 = scmp.ne.s32.totalorder %s80, %s81
      %p92 = scmp.eq.s32.totalorder %s23, 0
      %p93 = por %p91, %p92
      %p94 = scmp.ne.s32.totalorder %s80, %s81
      %p95 = scmp.eq.s32.totalorder %s24, 1
      %p96 = por %p94, %p95
      %p98 = scmp.ne.s32.totalorder %s81, %s97
      %p99 = scmp.eq.s32.totalorder %s24, 0
      %p100 = por %p98, %p99
      %s102 = sadd.s32 %s101, 1
      %p105 = scmp.eq.s32.totalorder %s18, 1
      %p106 = scmp.ne.s32.totalorder %s101, %s103
      %p107 = scmp.eq.s32.totalorder %s18, 0
      %p108 = por %p106, %p107
      %p109 = scmp.ne.s32.totalorder %s101, %s103
      %p110 = scmp.eq.s32.totalorder %s23, 1
      %p111 = por %p109, %p110
      %p112 = scmp.ne.s32.totalorder %s103, %s104
      %p113 = scmp.eq.s32.totalorder %s23, 0
      %p114 = por %p112, %p113
      %p115 = scmp.ne.s32.totalorder %s103, %s104
      %p116 = scmp.eq.s32.totalorder %s24, 1
      %p117 = por %p115, %p116
      %p119 = scmp.ne.s32.totalorder %s104, %s118
      %p120 = scmp.eq.s32.totalorder %s24, 0
      %p121 = por %p119, %p120
      %s122 = sadd.s32 %s26, %s27
      %s123 = sadd.s32 %s40, %s36
      %s124 = ssub.s32 %s25, %s44
      %s125 = ssub.s32 %s122, %s123
      %s126 = sor.u32 %s124, %s125
      %p127 = scmp.eq.s32.totalorder %s126, 0
      %s129 = sadd.s32 %s128, 1
      %s130 = scalar_select %p127, %s128, %s129
      %p133 = pneg %p127
      %p134 = scmp.eq.s32.totalorder %s18, 1
      %p135 = por %p133, %p134
      %p136 = scmp.ne.s32.totalorder %s128, %s131
      %p137 = scmp.eq.s32.totalorder %s18, 0
      %p138 = por %p136, %p137
      %p139 = scmp.ne.s32.totalorder %s128, %s131
      %p140 = scmp.eq.s32.totalorder %s23, 1
      %p141 = por %p139, %p140
      %p142 = scmp.ne.s32.totalorder %s131, %s132
      %p143 = scmp.eq.s32.totalorder %s23, 0
      %p144 = por %p142, %p143
      %p145 = scmp.ne.s32.totalorder %s131, %s132
      %p146 = scmp.eq.s32.totalorder %s24, 1
      %p147 = por %p145, %p146
      %p149 = scmp.ne.s32.totalorder %s132, %s148
      %p150 = scmp.eq.s32.totalorder %s24, 0
      %p151 = por %p149, %p150
      %p152 = scmp.le.s32.totalorder 1, %s18
      %p153 = scmp.lt.s32.totalorder %s18, 3
      %p154 = pnand %p152, %p153
      %p155 = pneg %p154
      // Predicated region
      $region9: #{tpu_custom_call.1} parent=5 // pred_check
        _
      $region10: #{tpu_custom_call.1} parent=5 // pred_check_branch
        %157 = sbr.rel (%p154) target = $region12
      $region11: #{tpu_custom_call.1} parent=5 // pred_region
        %s158 = ssub.s32 %s18, 1
        // Predicated region
        $region13: #{tpu_custom_call.1} parent=11 // pred_check
          %p159 = pneg %p114
        $region14: #{tpu_custom_call.1} parent=11 // pred_check_branch
          %161 = sbr.rel (%p159) target = $region16
        $region15: #{tpu_custom_call.1} parent=11 // pred_region
          %s163 = ssub.s32 16384, 16384
          %164 = vsyncadd [#allocation7], %s163
          %s165 = sshll.u32 [#allocation8], 4
          %s166 = int_to_ptr.vmem [resolvable:$true] %s165
          %171 = dma.hbm_to_vmem [thread:$0]  %s2, 16384, %s166, [#allocation7], 256, 256, 16
        $region16: #{tpu_custom_call.1} parent=11 // pred_fallthru
          _
      $region12: #{tpu_custom_call.1} parent=5 // pred_fallthru
        _
      %p172 = scmp.lt.s32.totalorder %s18, 2
      // Predicated region
      $region17: #{tpu_custom_call.1} parent=5 // pred_check
        %p173 = pneg %p172
      $region18: #{tpu_custom_call.1} parent=5 // pred_check_branch
        %175 = sbr.rel (%p173) target = $region20
      $region19: #{tpu_custom_call.1} parent=5 // pred_region
        // Predicated region
        $region21: #{tpu_custom_call.1} parent=19 // pred_check
          %p176 = pneg %p57
        $region22: #{tpu_custom_call.1} parent=19 // pred_check_branch
          %178 = sbr.rel (%p176) target = $region24
        $region23: #{tpu_custom_call.1} parent=19 // pred_region
          %s179 = sand.u32 %s47, 1
          %s180 = scalar_lea.sflag [#allocation4], %s179
          %s181 = sand.u32 %s47, 1
          %s182 = smul.addr %s181, 2
          %s183 = scalar_lea.vmem [#allocation3], %s182
          %s185 = ssub.s32 32, 32
          %186 = vsyncadd %s180, %s185
          %s187 = smul.addr %s25, 2
          %s188 = smul.addr %s187, 16
          %s189 = scalar_lea.hbm %s0, %s188
          %s191 = sshll.u32 %s183, 4
          %s192 = int_to_ptr.vmem [resolvable:$true] %s191
          %194 = dma.hbm_to_vmem [thread:$0]  %s189, 32, %s192, %s180
        $region24: #{tpu_custom_call.1} parent=19 // pred_fallthru
          _
        // Predicated region
        $region25: #{tpu_custom_call.1} parent=19 // pred_check
          %p195 = pneg %p87
        $region26: #{tpu_custom_call.1} parent=19 // pred_check_branch
          %197 = sbr.rel (%p195) target = $region28
        $region27: #{tpu_custom_call.1} parent=19 // pred_region
          %s198 = sand.u32 %s18, 1
          %s199 = scalar_lea.sflag [#allocation7], %s198
          %s200 = sand.u32 %s77, 1
          %s201 = smul.addr %s200, 256
          %s202 = scalar_lea.vmem [#allocation6], %s201
          %s203 = sadd.s32 %s26, %s27
          %s204 = smul.u32 16, %s203
          %s206 = ssub.s32 4096, 4096
          %207 = vsyncadd %s199, %s206
          %s208 = smul.addr %s204, 4
          %s209 = smul.addr %s25, 64
          %s210 = sadd.s32 %s208, %s209
          %s211 = smul.addr %s210, 64
          %s212 = scalar_lea.hbm %s1, %s211
          %s213 = sshll.u32 %s202, 4
          %s214 = int_to_ptr.vmem [resolvable:$true] %s213
          %219 = dma.hbm_to_vmem [thread:$0]  %s212, 4096, %s214, %s199, 256, 256, 16
        $region28: #{tpu_custom_call.1} parent=19 // pred_fallthru
          _
      $region20: #{tpu_custom_call.1} parent=5 // pred_fallthru
        _
      %p220 = scmp.le.s32.totalorder 1, %s18
      %p221 = scmp.lt.s32.totalorder %s18, 3
      %p222 = pnand %p220, %p221
      %p223 = pneg %p222
      // Predicated region
      $region29: #{tpu_custom_call.1} parent=5 // pred_check
        _
      $region30: #{tpu_custom_call.1} parent=5 // pred_check_branch
        %225 = sbr.rel (%p222) target = $region32
      $region31: #{tpu_custom_call.1} parent=5 // pred_region
        %s226 = ssub.s32 %s18, 1
        %s227 = sand.u32 %s50, 1
        %s228 = scalar_lea.sflag [#allocation4], %s227
        %s229 = sand.u32 %s50, 1
        %s230 = smul.addr %s229, 2
        %s231 = scalar_lea.vmem [#allocation3], %s230
        // Predicated region
        $region33: #{tpu_custom_call.1} parent=31 // pred_check
          %p232 = pneg %p63
        $region34: #{tpu_custom_call.1} parent=31 // pred_check_branch
          %234 = sbr.rel (%p232) target = $region36
        $region35: #{tpu_custom_call.1} parent=31 // pred_region
          %235 = dma.done %s228, 32
        $region36: #{tpu_custom_call.1} parent=31 // pred_fallthru
          _
        %s236 = sand.u32 %s23, 1
        %s237 = scalar_lea.sflag [#allocation7], %s236
        %s238 = sand.u32 %s80, 1
        %s239 = smul.addr %s238, 256
        %s240 = scalar_lea.vmem [#allocation6], %s239
        // Predicated region
        $region37: #{tpu_custom_call.1} parent=31 // pred_check
          %p241 = pneg %p93
        $region38: #{tpu_custom_call.1} parent=31 // pred_check_branch
          %243 = sbr.rel (%p241) target = $region40
        $region39: #{tpu_custom_call.1} parent=31 // pred_region
          %244 = dma.done %s237, 4096
        $region40: #{tpu_custom_call.1} parent=31 // pred_fallthru
          _
        // Predicated region
        $region41: #{tpu_custom_call.1} parent=31 // pred_check
          %p245 = pneg %p114
        $region42: #{tpu_custom_call.1} parent=31 // pred_check_branch
          %247 = sbr.rel (%p245) target = $region44
        $region43: #{tpu_custom_call.1} parent=31 // pred_region
          %248 = dma.done [#allocation7], 16384
        $region44: #{tpu_custom_call.1} parent=31 // pred_fallthru
          _
        %s249 = sand.u32 %s50, 1
        %s250 = scalar_lea.sflag [#allocation4], %s249
        %s251 = sand.u32 %s50, 1
        %s252 = smul.addr %s251, 2
        %s253 = scalar_lea.vmem [#allocation3], %s252
        %p254 = pneg %p63
        %p255 = pneg %p60
        %s256 = sand.u32 %s23, 1
        %s257 = scalar_lea.sflag [#allocation7], %s256
        %s258 = sand.u32 %s80, 1
        %s259 = smul.addr %s258, 256
        %s260 = scalar_lea.vmem [#allocation6], %s259
        %p261 = pneg %p93
        %p262 = pneg %p90
        %p263 = pneg %p114
        %p264 = pneg %p111
        %p265 = pneg %p144
        %p266 = pneg %p141
        %s267 = sand.u32 %s131, 1
        %s268 = scalar_lea.sflag [#allocation5], %s267
        %s269 = sand.u32 %s131, 1
        %s270 = smul.addr %s269, 256
        %s271 = scalar_lea.vmem [#allocation9], %s270
        %s272 = sadd.s32 %s29, %s30
        %s273 = smul.u32 16, %s272
        %s274 = sadd.s32 %s29, %s30
        %s275 = smul.u32 16, %s274
        %p276 = scmp.eq.s32.totalorder %s30, 0
        // Predicated region
        $region45: #{tpu_custom_call.1} parent=31 // pred_check
          %p277 = pneg %p276
        $region46: #{tpu_custom_call.1} parent=31 // pred_check_branch
          %279 = sbr.rel (%p277) target = $region48
        $region47: #{tpu_custom_call.1} parent=31 // pred_region
          %s280 = smul.u32 %s29, 2
          %s281 = scalar_lea.vmem %s231, %s280 [#allocation3]
          %v282 = vld [vmem:[%s281] sm:$0x3]
          %v283 = vlaneseq
          %vm284 = vcmp.ge.s32.totalorder %v283, 0
          %vm285 = vcmp.lt.s32.totalorder %v283, 256
          %vm286 = vmand %vm284, %vm285
          %287 = vst.msk [vmem:[#allocation2] sm:$0x3] %vm286, %v282
        $region48: #{tpu_custom_call.1} parent=31 // pred_fallthru
          _
        %v288 = vld [vmem:[%s240] sm:$0xff]
        %v289 = vld [vmem:[%s240 + $0x8] sm:$0xff]
        %v290 = vld [vmem:[%s240 + $0x10] sm:$0xff]
        %v291 = vld [vmem:[%s240 + $0x18] sm:$0xff]
        %v292 = vld [vmem:[%s240 + $0x20] sm:$0xff]
        %v293 = vld [vmem:[%s240 + $0x28] sm:$0xff]
        %v294 = vld [vmem:[%s240 + $0x30] sm:$0xff]
        %v295 = vld [vmem:[%s240 + $0x38] sm:$0xff]
        %v296 = vld [vmem:[%s240 + $0x40] sm:$0xff]
        %v297 = vld [vmem:[%s240 + $0x48] sm:$0xff]
        %v298 = vld [vmem:[%s240 + $0x50] sm:$0xff]
        %v299 = vld [vmem:[%s240 + $0x58] sm:$0xff]
        %v300 = vld [vmem:[%s240 + $0x60] sm:$0xff]
        %v301 = vld [vmem:[%s240 + $0x68] sm:$0xff]
        %v302 = vld [vmem:[%s240 + $0x70] sm:$0xff]
        %v303 = vld [vmem:[%s240 + $0x78] sm:$0xff]
        %v304 = vld [vmem:[%s240 + $0x80] sm:$0xff]
        %v305 = vld [vmem:[%s240 + $0x88] sm:$0xff]
        %v306 = vld [vmem:[%s240 + $0x90] sm:$0xff]
        %v307 = vld [vmem:[%s240 + $0x98] sm:$0xff]
        %v308 = vld [vmem:[%s240 + $0xa0] sm:$0xff]
        %v309 = vld [vmem:[%s240 + $0xa8] sm:$0xff]
        %v310 = vld [vmem:[%s240 + $0xb0] sm:$0xff]
        %v311 = vld [vmem:[%s240 + $0xb8] sm:$0xff]
        %v312 = vld [vmem:[%s240 + $0xc0] sm:$0xff]
        %v313 = vld [vmem:[%s240 + $0xc8] sm:$0xff]
        %v314 = vld [vmem:[%s240 + $0xd0] sm:$0xff]
        %v315 = vld [vmem:[%s240 + $0xd8] sm:$0xff]
        %v316 = vld [vmem:[%s240 + $0xe0] sm:$0xff]
        %v317 = vld [vmem:[%s240 + $0xe8] sm:$0xff]
        %v318 = vld [vmem:[%s240 + $0xf0] sm:$0xff]
        %v319 = vld [vmem:[%s240 + $0xf8] sm:$0xff]
        %v320 = vld [vmem:[#allocation8 + $0x8] sm:$0xff]
        %v321 = vld [vmem:[#allocation8 + $0x18] sm:$0xff]
        %v322 = vld [vmem:[#allocation8 + $0x28] sm:$0xff]
        %v323 = vld [vmem:[#allocation8 + $0x38] sm:$0xff]
        %v324 = vld [vmem:[#allocation8 + $0x48] sm:$0xff]
        %v325 = vld [vmem:[#allocation8 + $0x58] sm:$0xff]
        %v326 = vld [vmem:[#allocation8 + $0x68] sm:$0xff]
        %v327 = vld [vmem:[#allocation8 + $0x78] sm:$0xff]
        %v328 = vld [vmem:[#allocation8 + $0x88] sm:$0xff]
        %v329 = vld [vmem:[#allocation8 + $0x98] sm:$0xff]
        %v330 = vld [vmem:[#allocation8 + $0xa8] sm:$0xff]
        %v331 = vld [vmem:[#allocation8 + $0xb8] sm:$0xff]
        %v332 = vld [vmem:[#allocation8 + $0xc8] sm:$0xff]
        %v333 = vld [vmem:[#allocation8 + $0xd8] sm:$0xff]
        %v334 = vld [vmem:[#allocation8 + $0xe8] sm:$0xff]
        %v335 = vld [vmem:[#allocation8 + $0xf8] sm:$0xff]
        %v336 = vld [vmem:[#allocation8 + $0x108] sm:$0xff]
        %v337 = vld [vmem:[#allocation8 + $0x118] sm:$0xff]
        %v338 = vld [vmem:[#allocation8 + $0x128] sm:$0xff]
        %v339 = vld [vmem:[#allocation8 + $0x138] sm:$0xff]
        %v340 = vld [vmem:[#allocation8 + $0x148] sm:$0xff]
        %v341 = vld [vmem:[#allocation8 + $0x158] sm:$0xff]
        %v342 = vld [vmem:[#allocation8 + $0x168] sm:$0xff]
        %v343 = vld [vmem:[#allocation8 + $0x178] sm:$0xff]
        %v344 = vld [vmem:[#allocation8 + $0x188] sm:$0xff]
        %v345 = vld [vmem:[#allocation8 + $0x198] sm:$0xff]
        %v346 = vld [vmem:[#allocation8 + $0x1a8] sm:$0xff]
        %v347 = vld [vmem:[#allocation8 + $0x1b8] sm:$0xff]
        %v348 = vld [vmem:[#allocation8 + $0x1c8] sm:$0xff]
        %v349 = vld [vmem:[#allocation8 + $0x1d8] sm:$0xff]
        %v350 = vld [vmem:[#allocation8 + $0x1e8] sm:$0xff]
        %v351 = vld [vmem:[#allocation8 + $0x1f8] sm:$0xff]
        %v352 = vld [vmem:[#allocation8 + $0x208] sm:$0xff]
        %v353 = vld [vmem:[#allocation8 + $0x218] sm:$0xff]
        %v354 = vld [vmem:[#allocation8 + $0x228] sm:$0xff]
        %v355 = vld [vmem:[#allocation8 + $0x238] sm:$0xff]
        %v356 = vld [vmem:[#allocation8 + $0x248] sm:$0xff]
        %v357 = vld [vmem:[#allocation8 + $0x258] sm:$0xff]
        %v358 = vld [vmem:[#allocation8 + $0x268] sm:$0xff]
        %v359 = vld [vmem:[#allocation8 + $0x278] sm:$0xff]
        %v360 = vld [vmem:[#allocation8 + $0x288] sm:$0xff]
        %v361 = vld [vmem:[#allocation8 + $0x298] sm:$0xff]
        %v362 = vld [vmem:[#allocation8 + $0x2a8] sm:$0xff]
        %v363 = vld [vmem:[#allocation8 + $0x2b8] sm:$0xff]
        %v364 = vld [vmem:[#allocation8 + $0x2c8] sm:$0xff]
        %v365 = vld [vmem:[#allocation8 + $0x2d8] sm:$0xff]
        %v366 = vld [vmem:[#allocation8 + $0x2e8] sm:$0xff]
        %v367 = vld [vmem:[#allocation8 + $0x2f8] sm:$0xff]
        %v368 = vld [vmem:[#allocation8 + $0x308] sm:$0xff]
        %v369 = vld [vmem:[#allocation8 + $0x318] sm:$0xff]
        %v370 = vld [vmem:[#allocation8 + $0x328] sm:$0xff]
        %v371 = vld [vmem:[#allocation8 + $0x338] sm:$0xff]
        %v372 = vld [vmem:[#allocation8 + $0x348] sm:$0xff]
        %v373 = vld [vmem:[#allocation8 + $0x358] sm:$0xff]
        %v374 = vld [vmem:[#allocation8 + $0x368] sm:$0xff]
        %v375 = vld [vmem:[#allocation8 + $0x378] sm:$0xff]
        %v376 = vld [vmem:[#allocation8 + $0x388] sm:$0xff]
        %v377 = vld [vmem:[#allocation8 + $0x398] sm:$0xff]
        %v378 = vld [vmem:[#allocation8 + $0x3a8] sm:$0xff]
        %v379 = vld [vmem:[#allocation8 + $0x3b8] sm:$0xff]
        %v380 = vld [vmem:[#allocation8 + $0x3c8] sm:$0xff]
        %v381 = vld [vmem:[#allocation8 + $0x3d8] sm:$0xff]
        %v382 = vld [vmem:[#allocation8 + $0x3e8] sm:$0xff]
        %v383 = vld [vmem:[#allocation8 + $0x3f8] sm:$0xff]
        %v416 = vunpack.c.l.b16 %v288
        %v417 = vunpack.c.h.b16 %v288
        %v418 = vunpack.c.l.b16 %v289
        %v419 = vunpack.c.h.b16 %v289
        %v420 = vunpack.c.l.b16 %v290
        %v421 = vunpack.c.h.b16 %v290
        %v422 = vunpack.c.l.b16 %v291
        %v423 = vunpack.c.h.b16 %v291
        %v424 = vunpack.c.l.b16 %v292
        %v425 = vunpack.c.h.b16 %v292
        %v426 = vunpack.c.l.b16 %v293
        %v427 = vunpack.c.h.b16 %v293
        %v428 = vunpack.c.l.b16 %v294
        %v429 = vunpack.c.h.b16 %v294
        %v430 = vunpack.c.l.b16 %v295
        %v431 = vunpack.c.h.b16 %v295
        %v432 = vunpack.c.l.b16 %v296
        %v433 = vunpack.c.h.b16 %v296
        %v434 = vunpack.c.l.b16 %v297
        %v435 = vunpack.c.h.b16 %v297
        %v436 = vunpack.c.l.b16 %v298
        %v437 = vunpack.c.h.b16 %v298
        %v438 = vunpack.c.l.b16 %v299
        %v439 = vunpack.c.h.b16 %v299
        %v440 = vunpack.c.l.b16 %v300
        %v441 = vunpack.c.h.b16 %v300
        %v442 = vunpack.c.l.b16 %v301
        %v443 = vunpack.c.h.b16 %v301
        %v444 = vunpack.c.l.b16 %v302
        %v445 = vunpack.c.h.b16 %v302
        %v446 = vunpack.c.l.b16 %v303
        %v447 = vunpack.c.h.b16 %v303
        %v448 = vunpack.c.l.b16 %v304
        %v449 = vunpack.c.h.b16 %v304
        %v450 = vunpack.c.l.b16 %v305
        %v451 = vunpack.c.h.b16 %v305
        %v452 = vunpack.c.l.b16 %v306
        %v453 = vunpack.c.h.b16 %v306
        %v454 = vunpack.c.l.b16 %v307
        %v455 = vunpack.c.h.b16 %v307
        %v456 = vunpack.c.l.b16 %v308
        %v457 = vunpack.c.h.b16 %v308
        %v458 = vunpack.c.l.b16 %v309
        %v459 = vunpack.c.h.b16 %v309
        %v460 = vunpack.c.l.b16 %v310
        %v461 = vunpack.c.h.b16 %v310
        %v462 = vunpack.c.l.b16 %v311
        %v463 = vunpack.c.h.b16 %v311
        %v464 = vunpack.c.l.b16 %v312
        %v465 = vunpack.c.h.b16 %v312
        %v466 = vunpack.c.l.b16 %v313
        %v467 = vunpack.c.h.b16 %v313
        %v468 = vunpack.c.l.b16 %v314
        %v469 = vunpack.c.h.b16 %v314
        %v470 = vunpack.c.l.b16 %v315
        %v471 = vunpack.c.h.b16 %v315
        %v472 = vunpack.c.l.b16 %v316
        %v473 = vunpack.c.h.b16 %v316
        %v474 = vunpack.c.l.b16 %v317
        %v475 = vunpack.c.h.b16 %v317
        %v476 = vunpack.c.l.b16 %v318
        %v477 = vunpack.c.h.b16 %v318
        %v478 = vunpack.c.l.b16 %v319
        %v479 = vunpack.c.h.b16 %v319
        %v480 = vpack.c.b16 %v420, %v416
        %v481 = vpack.c.b16 %v421, %v417
        %v482 = vpack.c.b16 %v422, %v418
        %v483 = vpack.c.b16 %v423, %v419
        %v484 = vpack.c.b16 %v428, %v424
        %v485 = vpack.c.b16 %v429, %v425
        %v486 = vpack.c.b16 %v430, %v426
        %v487 = vpack.c.b16 %v431, %v427
        %v488 = vpack.c.b16 %v436, %v432
        %v489 = vpack.c.b16 %v437, %v433
        %v490 = vpack.c.b16 %v438, %v434
        %v491 = vpack.c.b16 %v439, %v435
        %v492 = vpack.c.b16 %v444, %v440
        %v493 = vpack.c.b16 %v445, %v441
        %v494 = vpack.c.b16 %v446, %v442
        %v495 = vpack.c.b16 %v447, %v443
        %v496 = vpack.c.b16 %v452, %v448
        %v497 = vpack.c.b16 %v453, %v449
        %v498 = vpack.c.b16 %v454, %v450
        %v499 = vpack.c.b16 %v455, %v451
        %v500 = vpack.c.b16 %v460, %v456
        %v501 = vpack.c.b16 %v461, %v457
        %v502 = vpack.c.b16 %v462, %v458
        %v503 = vpack.c.b16 %v463, %v459
        %v504 = vpack.c.b16 %v468, %v464
        %v505 = vpack.c.b16 %v469, %v465
        %v506 = vpack.c.b16 %v470, %v466
        %v507 = vpack.c.b16 %v471, %v467
        %v508 = vpack.c.b16 %v476, %v472
        %v509 = vpack.c.b16 %v477, %v473
        %v510 = vpack.c.b16 %v478, %v474
        %v511 = vpack.c.b16 %v479, %v475
        %v608 = vunpack.c.l.b16 %v320
        %v609 = vunpack.c.h.b16 %v320
        %v610 = vunpack.c.l.b16 %v321
        %v611 = vunpack.c.h.b16 %v321
        %v612 = vunpack.c.l.b16 %v322
        %v613 = vunpack.c.h.b16 %v322
        %v614 = vunpack.c.l.b16 %v323
        %v615 = vunpack.c.h.b16 %v323
        %v616 = vunpack.c.l.b16 %v324
        %v617 = vunpack.c.h.b16 %v324
        %v618 = vunpack.c.l.b16 %v325
        %v619 = vunpack.c.h.b16 %v325
        %v620 = vunpack.c.l.b16 %v326
        %v621 = vunpack.c.h.b16 %v326
        %v622 = vunpack.c.l.b16 %v327
        %v623 = vunpack.c.h.b16 %v327
        %v624 = vunpack.c.l.b16 %v328
        %v625 = vunpack.c.h.b16 %v328
        %v626 = vunpack.c.l.b16 %v329
        %v627 = vunpack.c.h.b16 %v329
        %v628 = vunpack.c.l.b16 %v330
        %v629 = vunpack.c.h.b16 %v330
        %v630 = vunpack.c.l.b16 %v331
        %v631 = vunpack.c.h.b16 %v331
        %v632 = vunpack.c.l.b16 %v332
        %v633 = vunpack.c.h.b16 %v332
        %v634 = vunpack.c.l.b16 %v333
        %v635 = vunpack.c.h.b16 %v333
        %v636 = vunpack.c.l.b16 %v334
        %v637 = vunpack.c.h.b16 %v334
        %v638 = vunpack.c.l.b16 %v335
        %v639 = vunpack.c.h.b16 %v335
        %v640 = vunpack.c.l.b16 %v336
        %v641 = vunpack.c.h.b16 %v336
        %v642 = vunpack.c.l.b16 %v337
        %v643 = vunpack.c.h.b16 %v337
        %v644 = vunpack.c.l.b16 %v338
        %v645 = vunpack.c.h.b16 %v338
        %v646 = vunpack.c.l.b16 %v339
        %v647 = vunpack.c.h.b16 %v339
        %v648 = vunpack.c.l.b16 %v340
        %v649 = vunpack.c.h.b16 %v340
        %v650 = vunpack.c.l.b16 %v341
        %v651 = vunpack.c.h.b16 %v341
        %v652 = vunpack.c.l.b16 %v342
        %v653 = vunpack.c.h.b16 %v342
        %v654 = vunpack.c.l.b16 %v343
        %v655 = vunpack.c.h.b16 %v343
        %v656 = vunpack.c.l.b16 %v344
        %v657 = vunpack.c.h.b16 %v344
        %v658 = vunpack.c.l.b16 %v345
        %v659 = vunpack.c.h.b16 %v345
        %v660 = vunpack.c.l.b16 %v346
        %v661 = vunpack.c.h.b16 %v346
        %v662 = vunpack.c.l.b16 %v347
        %v663 = vunpack.c.h.b16 %v347
        %v664 = vunpack.c.l.b16 %v348
        %v665 = vunpack.c.h.b16 %v348
        %v666 = vunpack.c.l.b16 %v349
        %v667 = vunpack.c.h.b16 %v349
        %v668 = vunpack.c.l.b16 %v350
        %v669 = vunpack.c.h.b16 %v350
        %v670 = vunpack.c.l.b16 %v351
        %v671 = vunpack.c.h.b16 %v351
        %v672 = vunpack.c.l.b16 %v352
        %v673 = vunpack.c.h.b16 %v352
        %v674 = vunpack.c.l.b16 %v353
        %v675 = vunpack.c.h.b16 %v353
        %v676 = vunpack.c.l.b16 %v354
        %v677 = vunpack.c.h.b16 %v354
        %v678 = vunpack.c.l.b16 %v355
        %v679 = vunpack.c.h.b16 %v355
        %v680 = vunpack.c.l.b16 %v356
        %v681 = vunpack.c.h.b16 %v356
        %v682 = vunpack.c.l.b16 %v357
        %v683 = vunpack.c.h.b16 %v357
        %v684 = vunpack.c.l.b16 %v358
        %v685 = vunpack.c.h.b16 %v358
        %v686 = vunpack.c.l.b16 %v359
        %v687 = vunpack.c.h.b16 %v359
        %v688 = vunpack.c.l.b16 %v360
        %v689 = vunpack.c.h.b16 %v360
        %v690 = vunpack.c.l.b16 %v361
        %v691 = vunpack.c.h.b16 %v361
        %v692 = vunpack.c.l.b16 %v362
        %v693 = vunpack.c.h.b16 %v362
        %v694 = vunpack.c.l.b16 %v363
        %v695 = vunpack.c.h.b16 %v363
        %v696 = vunpack.c.l.b16 %v364
        %v697 = vunpack.c.h.b16 %v364
        %v698 = vunpack.c.l.b16 %v365
        %v699 = vunpack.c.h.b16 %v365
        %v700 = vunpack.c.l.b16 %v366
        %v701 = vunpack.c.h.b16 %v366
        %v702 = vunpack.c.l.b16 %v367
        %v703 = vunpack.c.h.b16 %v367
        %v704 = vunpack.c.l.b16 %v368
        %v705 = vunpack.c.h.b16 %v368
        %v706 = vunpack.c.l.b16 %v369
        %v707 = vunpack.c.h.b16 %v369
        %v708 = vunpack.c.l.b16 %v370
        %v709 = vunpack.c.h.b16 %v370
        %v710 = vunpack.c.l.b16 %v371
        %v711 = vunpack.c.h.b16 %v371
        %v712 = vunpack.c.l.b16 %v372
        %v713 = vunpack.c.h.b16 %v372
        %v714 = vunpack.c.l.b16 %v373
        %v715 = vunpack.c.h.b16 %v373
        %v716 = vunpack.c.l.b16 %v374
        %v717 = vunpack.c.h.b16 %v374
        %v718 = vunpack.c.l.b16 %v375
        %v719 = vunpack.c.h.b16 %v375
        %v720 = vunpack.c.l.b16 %v376
        %v721 = vunpack.c.h.b16 %v376
        %v722 = vunpack.c.l.b16 %v377
        %v723 = vunpack.c.h.b16 %v377
        %v724 = vunpack.c.l.b16 %v378
        %v725 = vunpack.c.h.b16 %v378
        %v726 = vunpack.c.l.b16 %v379
        %v727 = vunpack.c.h.b16 %v379
        %v728 = vunpack.c.l.b16 %v380
        %v729 = vunpack.c.h.b16 %v380
        %v730 = vunpack.c.l.b16 %v381
        %v731 = vunpack.c.h.b16 %v381
        %v732 = vunpack.c.l.b16 %v382
        %v733 = vunpack.c.h.b16 %v382
        %v734 = vunpack.c.l.b16 %v383
        %v735 = vunpack.c.h.b16 %v383
        %v736 = vpack.c.b16 %v610, %v608
        %v737 = vpack.c.b16 %v611, %v609
        %v738 = vpack.c.b16 %v614, %v612
        %v739 = vpack.c.b16 %v615, %v613
        %v740 = vpack.c.b16 %v618, %v616
        %v741 = vpack.c.b16 %v619, %v617
        %v742 = vpack.c.b16 %v622, %v620
        %v743 = vpack.c.b16 %v623, %v621
        %v744 = vpack.c.b16 %v626, %v624
        %v745 = vpack.c.b16 %v627, %v625
        %v746 = vpack.c.b16 %v630, %v628
        %v747 = vpack.c.b16 %v631, %v629
        %v748 = vpack.c.b16 %v634, %v632
        %v749 = vpack.c.b16 %v635, %v633
        %v750 = vpack.c.b16 %v638, %v636
        %v751 = vpack.c.b16 %v639, %v637
        %v752 = vpack.c.b16 %v642, %v640
        %v753 = vpack.c.b16 %v643, %v641
        %v754 = vpack.c.b16 %v646, %v644
        %v755 = vpack.c.b16 %v647, %v645
        %v756 = vpack.c.b16 %v650, %v648
        %v757 = vpack.c.b16 %v651, %v649
        %v758 = vpack.c.b16 %v654, %v652
        %v759 = vpack.c.b16 %v655, %v653
        %v760 = vpack.c.b16 %v658, %v656
        %v761 = vpack.c.b16 %v659, %v657
        %v762 = vpack.c.b16 %v662, %v660
        %v763 = vpack.c.b16 %v663, %v661
        %v764 = vpack.c.b16 %v666, %v664
        %v765 = vpack.c.b16 %v667, %v665
        %v766 = vpack.c.b16 %v670, %v668
        %v767 = vpack.c.b16 %v671, %v669
        %v768 = vpack.c.b16 %v674, %v672
        %v769 = vpack.c.b16 %v675, %v673
        %v770 = vpack.c.b16 %v678, %v676
        %v771 = vpack.c.b16 %v679, %v677
        %v772 = vpack.c.b16 %v682, %v680
        %v773 = vpack.c.b16 %v683, %v681
        %v774 = vpack.c.b16 %v686, %v684
        %v775 = vpack.c.b16 %v687, %v685
        %v776 = vpack.c.b16 %v690, %v688
        %v777 = vpack.c.b16 %v691, %v689
        %v778 = vpack.c.b16 %v694, %v692
        %v779 = vpack.c.b16 %v695, %v693
        %v780 = vpack.c.b16 %v698, %v696
        %v781 = vpack.c.b16 %v699, %v697
        %v782 = vpack.c.b16 %v702, %v700
        %v783 = vpack.c.b16 %v703, %v701
        %v784 = vpack.c.b16 %v706, %v704
        %v785 = vpack.c.b16 %v707, %v705
        %v786 = vpack.c.b16 %v710, %v708
        %v787 = vpack.c.b16 %v711, %v709
        %v788 = vpack.c.b16 %v714, %v712
        %v789 = vpack.c.b16 %v715, %v713
        %v790 = vpack.c.b16 %v718, %v716
        %v791 = vpack.c.b16 %v719, %v717
        %v792 = vpack.c.b16 %v722, %v720
        %v793 = vpack.c.b16 %v723, %v721
        %v794 = vpack.c.b16 %v726, %v724
        %v795 = vpack.c.b16 %v727, %v725
        %v796 = vpack.c.b16 %v730, %v728
        %v797 = vpack.c.b16 %v731, %v729
        %v798 = vpack.c.b16 %v734, %v732
        %v799 = vpack.c.b16 %v735, %v733
        %864 = vmatprep.subr.bf16.mxu0 %v737
        %865 = vmatpush1.bf16.msra.mxu0 %v736
        %866 = vmatprep.subr.bf16.mxu0 %v739
        %867 = vmatpush1.bf16.msra.mxu0 %v738
        %868 = vmatprep.subr.bf16.mxu0 %v741
        %869 = vmatpush1.bf16.msra.mxu0 %v740
        %870 = vmatprep.subr.bf16.mxu0 %v743
        %871 = vmatpush1.bf16.msra.mxu0 %v742
        %872 = vmatprep.subr.bf16.mxu0 %v745
        %873 = vmatpush1.bf16.msra.mxu0 %v744
        %874 = vmatprep.subr.bf16.mxu0 %v747
        %875 = vmatpush1.bf16.msra.mxu0 %v746
        %876 = vmatprep.subr.bf16.mxu0 %v749
        %877 = vmatpush1.bf16.msra.mxu0 %v748
        %878 = vmatprep.subr.bf16.mxu0 %v751
        %879 = vmatpush1.bf16.msra.mxu0 %v750
        %880 = vmatprep.subr.bf16.mxu0 %v753
        %881 = vmatpush1.bf16.msra.mxu0 %v752
        %882 = vmatprep.subr.bf16.mxu0 %v755
        %883 = vmatpush1.bf16.msra.mxu0 %v754
        %884 = vmatprep.subr.bf16.mxu0 %v757
        %885 = vmatpush1.bf16.msra.mxu0 %v756
        %886 = vmatprep.subr.bf16.mxu0 %v759
        %887 = vmatpush1.bf16.msra.mxu0 %v758
        %888 = vmatprep.subr.bf16.mxu0 %v761
        %889 = vmatpush1.bf16.msra.mxu0 %v760
        %890 = vmatprep.subr.bf16.mxu0 %v763
        %891 = vmatpush1.bf16.msra.mxu0 %v762
        %892 = vmatprep.subr.bf16.mxu0 %v765
        %893 = vmatpush1.bf16.msra.mxu0 %v764
        %894 = vmatprep.subr.bf16.mxu0 %v767
        %895 = vmatpush1.bf16.msra.mxu0 %v766
        %896 = vmatprep.mubr.bf16.mxu0 %v481
        %897 = vmatmul.mubr.bf16.gmra.mrb[0].mxu0 %v480
        %v898 = vpop.f32.mrb[0].mxu0
        %v899 = vadd.f32 0.0, %v898
        %v900 = vpop.f32.mrb[0].mxu0
        %v901 = vadd.f32 0.0, %v900
        %v902 = vpop.f32.mrb[0].mxu0
        %v903 = vadd.f32 0.0, %v902
        %v904 = vpop.f32.mrb[0].mxu0
        %v905 = vadd.f32 0.0, %v904
        %906 = vmatprep.mubr.bf16.mxu0 %v485
        %907 = vmatmul.mubr.bf16.gmra.mrb[0].mxu0 %v484
        %v908 = vpop.f32.mrb[0].mxu0
        %v909 = vadd.f32 0.0, %v908
        %v910 = vpop.f32.mrb[0].mxu0
        %v911 = vadd.f32 0.0, %v910
        %v912 = vpop.f32.mrb[0].mxu0
        %v913 = vadd.f32 0.0, %v912
        %v914 = vpop.f32.mrb[0].mxu0
        %v915 = vadd.f32 0.0, %v914
        %916 = vmatprep.mubr.bf16.mxu0 %v489
        %917 = vmatmul.mubr.bf16.gmra.mrb[0].mxu0 %v488
        %v918 = vpop.f32.mrb[0].mxu0
        %v919 = vadd.f32 0.0, %v918
        %v920 = vpop.f32.mrb[0].mxu0
        %v921 = vadd.f32 0.0, %v920
        %v922 = vpop.f32.mrb[0].mxu0
        %v923 = vadd.f32 0.0, %v922
        %v924 = vpop.f32.mrb[0].mxu0
        %v925 = vadd.f32 0.0, %v924
        %926 = vmatprep.mubr.bf16.mxu0 %v493
        %927 = vmatmul.mubr.bf16.gmra.mrb[0].mxu0 %v492
        %v928 = vpop.f32.mrb[0].mxu0
        %v929 = vadd.f32 0.0, %v928
        %v930 = vpop.f32.mrb[0].mxu0
        %v931 = vadd.f32 0.0, %v930
        %v932 = vpop.f32.mrb[0].mxu0
        %v933 = vadd.f32 0.0, %v932
        %v934 = vpop.f32.mrb[0].mxu0
        %v935 = vadd.f32 0.0, %v934
        %936 = vmatprep.mubr.bf16.mxu0 %v497
        %937 = vmatmul.mubr.bf16.gmra.mrb[0].mxu0 %v496
        %v938 = vpop.f32.mrb[0].mxu0
        %v939 = vadd.f32 0.0, %v938
        %v940 = vpop.f32.mrb[0].mxu0
        %v941 = vadd.f32 0.0, %v940
        %v942 = vpop.f32.mrb[0].mxu0
        %v943 = vadd.f32 0.0, %v942
        %v944 = vpop.f32.mrb[0].mxu0
        %v945 = vadd.f32 0.0, %v944
        %946 = vmatprep.mubr.bf16.mxu0 %v501
        %947 = vmatmul.mubr.bf16.gmra.mrb[0].mxu0 %v500
        %v948 = vpop.f32.mrb[0].mxu0
        %v949 = vadd.f32 0.0, %v948
        %v950 = vpop.f32.mrb[0].mxu0
        %v951 = vadd.f32 0.0, %v950
        %v952 = vpop.f32.mrb[0].mxu0
        %v953 = vadd.f32 0.0, %v952
        %v954 = vpop.f32.mrb[0].mxu0
        %v955 = vadd.f32 0.0, %v954
        %956 = vmatprep.mubr.bf16.mxu0 %v505
        %957 = vmatmul.mubr.bf16.gmra.mrb[0].mxu0 %v504
        %v958 = vpop.f32.mrb[0].mxu0
        %v959 = vadd.f32 0.0, %v958
        %v960 = vpop.f32.mrb[0].mxu0
        %v961 = vadd.f32 0.0, %v960
        %v962 = vpop.f32.mrb[0].mxu0
        %v963 = vadd.f32 0.0, %v962
        %v964 = vpop.f32.mrb[0].mxu0
        %v965 = vadd.f32 0.0, %v964
        %966 = vmatprep.mubr.bf16.mxu0 %v509
        %967 = vmatmul.mubr.bf16.gmra.mrb[0].mxu0 %v508
        %v968 = vpop.f32.mrb[0].mxu0
        %v969 = vadd.f32 0.0, %v968
        %v970 = vpop.f32.mrb[0].mxu0
        %v971 = vadd.f32 0.0, %v970
        %v972 = vpop.f32.mrb[0].mxu0
        %v973 = vadd.f32 0.0, %v972
        %v974 = vpop.f32.mrb[0].mxu0
        %v975 = vadd.f32 0.0, %v974
        %976 = vdwg.mxu0
        %977 = vmatprep.subr.bf16.mxu0 %v769
        %978 = vmatpush1.bf16.msra.mxu0 %v768
        %979 = vmatprep.subr.bf16.mxu0 %v771
        %980 = vmatpush1.bf16.msra.mxu0 %v770
        %981 = vmatprep.subr.bf16.mxu0 %v773
        %982 = vmatpush1.bf16.msra.mxu0 %v772
        %983 = vmatprep.subr.bf16.mxu0 %v775
        %984 = vmatpush1.bf16.msra.mxu0 %v774
        %985 = vmatprep.subr.bf16.mxu0 %v777
        %986 = vmatpush1.bf16.msra.mxu0 %v776
        %987 = vmatprep.subr.bf16.mxu0 %v779
        %988 = vmatpush1.bf16.msra.mxu0 %v778
        %989 = vmatprep.subr.bf16.mxu0 %v781
        %990 = vmatpush1.bf16.msra.mxu0 %v780
        %991 = vmatprep.subr.bf16.mxu0 %v783
        %992 = vmatpush1.bf16.msra.mxu0 %v782
        %993 = vmatprep.subr.bf16.mxu0 %v785
        %994 = vmatpush1.bf16.msra.mxu0 %v784
        %995 = vmatprep.subr.bf16.mxu0 %v787
        %996 = vmatpush1.bf16.msra.mxu0 %v786
        %997 = vmatprep.subr.bf16.mxu0 %v789
        %998 = vmatpush1.bf16.msra.mxu0 %v788
        %999 = vmatprep.subr.bf16.mxu0 %v791
        %1000 = vmatpush1.bf16.msra.mxu0 %v790
        %1001 = vmatprep.subr.bf16.mxu0 %v793
        %1002 = vmatpush1.bf16.msra.mxu0 %v792
        %1003 = vmatprep.subr.bf16.mxu0 %v795
        %1004 = vmatpush1.bf16.msra.mxu0 %v794
        %1005 = vmatprep.subr.bf16.mxu0 %v797
        %1006 = vmatpush1.bf16.msra.mxu0 %v796
        %1007 = vmatprep.subr.bf16.mxu0 %v799
        %1008 = vmatpush1.bf16.msra.mxu0 %v798
        %1009 = vmatprep.mubr.bf16.mxu0 %v483
        %1010 = vmatmul.mubr.bf16.gmra.mrb[0].mxu0 %v482
        %v1011 = vpop.f32.mrb[0].mxu0
        %v1012 = vadd.f32 %v899, %v1011
        %v1013 = vpop.f32.mrb[0].mxu0
        %v1014 = vadd.f32 %v901, %v1013
        %v1015 = vpop.f32.mrb[0].mxu0
        %v1016 = vadd.f32 %v903, %v1015
        %v1017 = vpop.f32.mrb[0].mxu0
        %v1018 = vadd.f32 %v905, %v1017
        %1019 = vmatprep.mubr.bf16.mxu0 %v487
        %1020 = vmatmul.mubr.bf16.gmra.mrb[0].mxu0 %v486
        %v1021 = vpop.f32.mrb[0].mxu0
        %v1022 = vadd.f32 %v909, %v1021
        %v1023 = vpop.f32.mrb[0].mxu0
        %v1024 = vadd.f32 %v911, %v1023
        %v1025 = vpop.f32.mrb[0].mxu0
        %v1026 = vadd.f32 %v913, %v1025
        %v1027 = vpop.f32.mrb[0].mxu0
        %v1028 = vadd.f32 %v915, %v1027
        %1029 = vmatprep.mubr.bf16.mxu0 %v491
        %1030 = vmatmul.mubr.bf16.gmra.mrb[0].mxu0 %v490
        %v1031 = vpop.f32.mrb[0].mxu0
        %v1032 = vadd.f32 %v919, %v1031
        %v1033 = vpop.f32.mrb[0].mxu0
        %v1034 = vadd.f32 %v921, %v1033
        %v1035 = vpop.f32.mrb[0].mxu0
        %v1036 = vadd.f32 %v923, %v1035
        %v1037 = vpop.f32.mrb[0].mxu0
        %v1038 = vadd.f32 %v925, %v1037
        %1039 = vmatprep.mubr.bf16.mxu0 %v495
        %1040 = vmatmul.mubr.bf16.gmra.mrb[0].mxu0 %v494
        %v1041 = vpop.f32.mrb[0].mxu0
        %v1042 = vadd.f32 %v929, %v1041
        %v1043 = vpop.f32.mrb[0].mxu0
        %v1044 = vadd.f32 %v931, %v1043
        %v1045 = vpop.f32.mrb[0].mxu0
        %v1046 = vadd.f32 %v933, %v1045
        %v1047 = vpop.f32.mrb[0].mxu0
        %v1048 = vadd.f32 %v935, %v1047
        %1049 = vmatprep.mubr.bf16.mxu0 %v499
        %1050 = vmatmul.mubr.bf16.gmra.mrb[0].mxu0 %v498
        %v1051 = vpop.f32.mrb[0].mxu0
        %v1052 = vadd.f32 %v939, %v1051
        %v1053 = vpop.f32.mrb[0].mxu0
        %v1054 = vadd.f32 %v941, %v1053
        %v1055 = vpop.f32.mrb[0].mxu0
        %v1056 = vadd.f32 %v943, %v1055
        %v1057 = vpop.f32.mrb[0].mxu0
        %v1058 = vadd.f32 %v945, %v1057
        %1059 = vmatprep.mubr.bf16.mxu0 %v503
        %1060 = vmatmul.mubr.bf16.gmra.mrb[0].mxu0 %v502
        %v1061 = vpop.f32.mrb[0].mxu0
        %v1062 = vadd.f32 %v949, %v1061
        %v1063 = vpop.f32.mrb[0].mxu0
        %v1064 = vadd.f32 %v951, %v1063
        %v1065 = vpop.f32.mrb[0].mxu0
        %v1066 = vadd.f32 %v953, %v1065
        %v1067 = vpop.f32.mrb[0].mxu0
        %v1068 = vadd.f32 %v955, %v1067
        %1069 = vmatprep.mubr.bf16.mxu0 %v507
        %1070 = vmatmul.mubr.bf16.gmra.mrb[0].mxu0 %v506
        %v1071 = vpop.f32.mrb[0].mxu0
        %v1072 = vadd.f32 %v959, %v1071
        %v1073 = vpop.f32.mrb[0].mxu0
        %v1074 = vadd.f32 %v961, %v1073
        %v1075 = vpop.f32.mrb[0].mxu0
        %v1076 = vadd.f32 %v963, %v1075
        %v1077 = vpop.f32.mrb[0].mxu0
        %v1078 = vadd.f32 %v965, %v1077
        %1079 = vmatprep.mubr.bf16.mxu0 %v511
        %1080 = vmatmul.mubr.bf16.gmra.mrb[0].mxu0 %v510
        %v1081 = vpop.f32.mrb[0].mxu0
        %v1082 = vadd.f32 %v969, %v1081
        %v1083 = vpop.f32.mrb[0].mxu0
        %v1084 = vadd.f32 %v971, %v1083
        %v1085 = vpop.f32.mrb[0].mxu0
        %v1086 = vadd.f32 %v973, %v1085
        %v1087 = vpop.f32.mrb[0].mxu0
        %v1088 = vadd.f32 %v975, %v1087
        %1089 = vdwg.mxu0
        %v1090 = vrot.slane %v1012, 7
        %v1091 = vrot.slane %v1014, 7
        %v1092 = vrot.slane %v1016, 7
        %v1093 = vrot.slane %v1018, 7
        %v1094 = vrot.slane %v1022, 7
        %v1095 = vrot.slane %v1024, 7
        %v1096 = vrot.slane %v1026, 7
        %v1097 = vrot.slane %v1028, 7
        %v1098 = vrot.slane %v1032, 7
        %v1099 = vrot.slane %v1034, 7
        %v1100 = vrot.slane %v1036, 7
        %v1101 = vrot.slane %v1038, 7
        %v1102 = vrot.slane %v1042, 7
        %v1103 = vrot.slane %v1044, 7
        %v1104 = vrot.slane %v1046, 7
        %v1105 = vrot.slane %v1048, 7
        %v1106 = vrot.slane %v1052, 7
        %v1107 = vrot.slane %v1054, 7
        %v1108 = vrot.slane %v1056, 7
        %v1109 = vrot.slane %v1058, 7
        %v1110 = vrot.slane %v1062, 7
        %v1111 = vrot.slane %v1064, 7
        %v1112 = vrot.slane %v1066, 7
        %v1113 = vrot.slane %v1068, 7
        %v1114 = vrot.slane %v1072, 7
        %v1115 = vrot.slane %v1074, 7
        %v1116 = vrot.slane %v1076, 7
        %v1117 = vrot.slane %v1078, 7
        %v1118 = vrot.slane %v1082, 7
        %v1119 = vrot.slane %v1084, 7
        %v1120 = vrot.slane %v1086, 7
        %v1121 = vrot.slane %v1088, 7
        %v1122 = vlaneseq
        %v1123 = vshrl.u32 %v1122, 7
        %vm1124 = vcmp.lt.s32.totalorder %v1123, 1
        %v1125 = vsel %vm1124, %v1118, %v1120
        %v1126 = vsel %vm1124, %v1119, %v1121
        %v1127 = vsel %vm1124, %v1116, %v1118
        %v1128 = vsel %vm1124, %v1117, %v1119
        %v1129 = vsel %vm1124, %v1114, %v1116
        %v1130 = vsel %vm1124, %v1115, %v1117
        %v1131 = vsel %vm1124, %v1112, %v1114
        %v1132 = vsel %vm1124, %v1113, %v1115
        %v1133 = vsel %vm1124, %v1110, %v1112
        %v1134 = vsel %vm1124, %v1111, %v1113
        %v1135 = vsel %vm1124, %v1108, %v1110
        %v1136 = vsel %vm1124, %v1109, %v1111
        %v1137 = vsel %vm1124, %v1106, %v1108
        %v1138 = vsel %vm1124, %v1107, %v1109
        %v1139 = vsel %vm1124, %v1104, %v1106
        %v1140 = vsel %vm1124, %v1105, %v1107
        %v1141 = vsel %vm1124, %v1102, %v1104
        %v1142 = vsel %vm1124, %v1103, %v1105
        %v1143 = vsel %vm1124, %v1100, %v1102
        %v1144 = vsel %vm1124, %v1101, %v1103
        %v1145 = vsel %vm1124, %v1098, %v1100
        %v1146 = vsel %vm1124, %v1099, %v1101
        %v1147 = vsel %vm1124, %v1096, %v1098
        %v1148 = vsel %vm1124, %v1097, %v1099
        %v1149 = vsel %vm1124, %v1094, %v1096
        %v1150 = vsel %vm1124, %v1095, %v1097
        %v1151 = vsel %vm1124, %v1092, %v1094
        %v1152 = vsel %vm1124, %v1093, %v1095
        %v1153 = vsel %vm1124, %v1090, %v1092
        %v1154 = vsel %vm1124, %v1091, %v1093
        %v1155 = vsel %vm1124, %v1120, %v1090
        %v1156 = vsel %vm1124, %v1121, %v1091
        %v1157 = vadd.s32 %v1123, 8
        %v1158 = vadd.s32 %v1123, 16
        %v1159 = vadd.s32 %v1123, 24
        %v1160 = vadd.s32 %v1123, 32
        %v1161 = vadd.s32 %v1123, 40
        %v1162 = vadd.s32 %v1123, 48
        %v1163 = vadd.s32 %v1123, 56
        %v1164 = vadd.s32 %v1123, 64
        %v1165 = vadd.s32 %v1123, 72
        %v1166 = vadd.s32 %v1123, 80
        %v1167 = vadd.s32 %v1123, 88
        %v1168 = vadd.s32 %v1123, 96
        %v1169 = vadd.s32 %v1123, 104
        %v1170 = vadd.s32 %v1123, 112
        %v1171 = vadd.s32 %v1123, 120
        %vm1172 = vcmp.eq.s32.totalorder %v1123, 0
        %vm1173 = vcmp.eq.s32.totalorder %v1157, 0
        %vm1174 = vcmp.eq.s32.totalorder %v1158, 0
        %vm1175 = vcmp.eq.s32.totalorder %v1159, 0
        %vm1176 = vcmp.eq.s32.totalorder %v1160, 0
        %vm1177 = vcmp.eq.s32.totalorder %v1161, 0
        %vm1178 = vcmp.eq.s32.totalorder %v1162, 0
        %vm1179 = vcmp.eq.s32.totalorder %v1163, 0
        %vm1180 = vcmp.eq.s32.totalorder %v1164, 0
        %vm1181 = vcmp.eq.s32.totalorder %v1165, 0
        %vm1182 = vcmp.eq.s32.totalorder %v1166, 0
        %vm1183 = vcmp.eq.s32.totalorder %v1167, 0
        %vm1184 = vcmp.eq.s32.totalorder %v1168, 0
        %vm1185 = vcmp.eq.s32.totalorder %v1169, 0
        %vm1186 = vcmp.eq.s32.totalorder %v1170, 0
        %vm1187 = vcmp.eq.s32.totalorder %v1171, 0
        %v1188 = vld [vmem:[#allocation2] sm:$0x3]
        %v1190 = vlaneseq
        %v1191 = vshrl.u32 %v1190, 7
        %v1192 = vsub.s32 0, %v1191
        %v1193 = vrot.slane %v1188, %v1192
        %v1194 = vlaneseq
        %v1195 = vshrl.u32 %v1194, 7
        %v1196 = vsub.s32 1, %v1195
        %v1197 = vrot.slane %v1188, %v1196
        %v1200 = vsel %vm1172, %v1193, %v1155
        %v1201 = vsel %vm1172, %v1197, %v1156
        %v1202 = vsel %vm1173, %v1193, %v1153
        %v1203 = vsel %vm1173, %v1197, %v1154
        %v1204 = vsel %vm1174, %v1193, %v1151
        %v1205 = vsel %vm1174, %v1197, %v1152
        %v1206 = vsel %vm1175, %v1193, %v1149
        %v1207 = vsel %vm1175, %v1197, %v1150
        %v1208 = vsel %vm1176, %v1193, %v1147
        %v1209 = vsel %vm1176, %v1197, %v1148
        %v1210 = vsel %vm1177, %v1193, %v1145
        %v1211 = vsel %vm1177, %v1197, %v1146
        %v1212 = vsel %vm1178, %v1193, %v1143
        %v1213 = vsel %vm1178, %v1197, %v1144
        %v1214 = vsel %vm1179, %v1193, %v1141
        %v1215 = vsel %vm1179, %v1197, %v1142
        %v1216 = vsel %vm1180, %v1193, %v1139
        %v1217 = vsel %vm1180, %v1197, %v1140
        %v1218 = vsel %vm1181, %v1193, %v1137
        %v1219 = vsel %vm1181, %v1197, %v1138
        %v1220 = vsel %vm1182, %v1193, %v1135
        %v1221 = vsel %vm1182, %v1197, %v1136
        %v1222 = vsel %vm1183, %v1193, %v1133
        %v1223 = vsel %vm1183, %v1197, %v1134
        %v1224 = vsel %vm1184, %v1193, %v1131
        %v1225 = vsel %vm1184, %v1197, %v1132
        %v1226 = vsel %vm1185, %v1193, %v1129
        %v1227 = vsel %vm1185, %v1197, %v1130
        %v1228 = vsel %vm1186, %v1193, %v1127
        %v1229 = vsel %vm1186, %v1197, %v1128
        %v1230 = vsel %vm1187, %v1193, %v1125
        %v1231 = vsel %vm1187, %v1197, %v1126
        %v1234 = vcombine.high %v1086, %v1088
        %v1236 = vunpack.c.l.s4 1966171168
        %v1237 = vunpack.c.0.s8 %v1236
        %v1238 = vlaneseq
        %v1239 = vshrl.u32 %v1238, 7
        %v1240 = vsub.s32 %v1237, %v1239
        %v1241 = vrot.slane %v1234, %v1240
        %v1242 = vcombine.high %v1241, %v1241
        %v1244 = vunpack.c.l.s4 1966171168
        %v1245 = vunpack.c.0.s8 %v1244
        %v1246 = vlaneseq
        %v1247 = vshrl.u32 %v1246, 7
        %v1248 = vsub.s32 %v1245, %v1247
        %v1249 = vrot.slane %v1242, %v1248
        %v1250 = vcombine.high %v1249, %v1249
        %v1252 = vlaneseq
        %vm1253 = vcmp.ge.s32.totalorder %v1252, 0
        %vm1254 = vcmp.lt.s32.totalorder %v1252, 256
        %vm1255 = vmand %vm1253, %vm1254
        %1256 = vst.msk [vmem:[#allocation2] sm:$0x3] %vm1255, %v1250
        %v1257 = vld [vmem:[%s240] sm:$0xff]
        %v1258 = vld [vmem:[%s240 + $0x8] sm:$0xff]
        %v1259 = vld [vmem:[%s240 + $0x10] sm:$0xff]
        %v1260 = vld [vmem:[%s240 + $0x18] sm:$0xff]
        %v1261 = vld [vmem:[%s240 + $0x20] sm:$0xff]
        %v1262 = vld [vmem:[%s240 + $0x28] sm:$0xff]
        %v1263 = vld [vmem:[%s240 + $0x30] sm:$0xff]
        %v1264 = vld [vmem:[%s240 + $0x38] sm:$0xff]
        %v1265 = vld [vmem:[%s240 + $0x40] sm:$0xff]
        %v1266 = vld [vmem:[%s240 + $0x48] sm:$0xff]
        %v1267 = vld [vmem:[%s240 + $0x50] sm:$0xff]
        %v1268 = vld [vmem:[%s240 + $0x58] sm:$0xff]
        %v1269 = vld [vmem:[%s240 + $0x60] sm:$0xff]
        %v1270 = vld [vmem:[%s240 + $0x68] sm:$0xff]
        %v1271 = vld [vmem:[%s240 + $0x70] sm:$0xff]
        %v1272 = vld [vmem:[%s240 + $0x78] sm:$0xff]
        %v1273 = vld [vmem:[%s240 + $0x80] sm:$0xff]
        %v1274 = vld [vmem:[%s240 + $0x88] sm:$0xff]
        %v1275 = vld [vmem:[%s240 + $0x90] sm:$0xff]
        %v1276 = vld [vmem:[%s240 + $0x98] sm:$0xff]
        %v1277 = vld [vmem:[%s240 + $0xa0] sm:$0xff]
        %v1278 = vld [vmem:[%s240 + $0xa8] sm:$0xff]
        %v1279 = vld [vmem:[%s240 + $0xb0] sm:$0xff]
        %v1280 = vld [vmem:[%s240 + $0xb8] sm:$0xff]
        %v1281 = vld [vmem:[%s240 + $0xc0] sm:$0xff]
        %v1282 = vld [vmem:[%s240 + $0xc8] sm:$0xff]
        %v1283 = vld [vmem:[%s240 + $0xd0] sm:$0xff]
        %v1284 = vld [vmem:[%s240 + $0xd8] sm:$0xff]
        %v1285 = vld [vmem:[%s240 + $0xe0] sm:$0xff]
        %v1286 = vld [vmem:[%s240 + $0xe8] sm:$0xff]
        %v1287 = vld [vmem:[%s240 + $0xf0] sm:$0xff]
        %v1288 = vld [vmem:[%s240 + $0xf8] sm:$0xff]
        %v1289 = vld [vmem:[#allocation8] sm:$0xff]
        %v1290 = vld [vmem:[#allocation8 + $0x10] sm:$0xff]
        %v1291 = vld [vmem:[#allocation8 + $0x20] sm:$0xff]
        %v1292 = vld [vmem:[#allocation8 + $0x30] sm:$0xff]
        %v1293 = vld [vmem:[#allocation8 + $0x40] sm:$0xff]
        %v1294 = vld [vmem:[#allocation8 + $0x50] sm:$0xff]
        %v1295 = vld [vmem:[#allocation8 + $0x60] sm:$0xff]
        %v1296 = vld [vmem:[#allocation8 + $0x70] sm:$0xff]
        %v1297 = vld [vmem:[#allocation8 + $0x80] sm:$0xff]
        %v1298 = vld [vmem:[#allocation8 + $0x90] sm:$0xff]
        %v1299 = vld [vmem:[#allocation8 + $0xa0] sm:$0xff]
        %v1300 = vld [vmem:[#allocation8 + $0xb0] sm:$0xff]
        %v1301 = vld [vmem:[#allocation8 + $0xc0] sm:$0xff]
        %v1302 = vld [vmem:[#allocation8 + $0xd0] sm:$0xff]
        %v1303 = vld [vmem:[#allocation8 + $0xe0] sm:$0xff]
        %v1304 = vld [vmem:[#allocation8 + $0xf0] sm:$0xff]
        %v1305 = vld [vmem:[#allocation8 + $0x100] sm:$0xff]
        %v1306 = vld [vmem:[#allocation8 + $0x110] sm:$0xff]
        %v1307 = vld [vmem:[#allocation8 + $0x120] sm:$0xff]
        %v1308 = vld [vmem:[#allocation8 + $0x130] sm:$0xff]
        %v1309 = vld [vmem:[#allocation8 + $0x140] sm:$0xff]
        %v1310 = vld [vmem:[#allocation8 + $0x150] sm:$0xff]
        %v1311 = vld [vmem:[#allocation8 + $0x160] sm:$0xff]
        %v1312 = vld [vmem:[#allocation8 + $0x170] sm:$0xff]
        %v1313 = vld [vmem:[#allocation8 + $0x180] sm:$0xff]
        %v1314 = vld [vmem:[#allocation8 + $0x190] sm:$0xff]
        %v1315 = vld [vmem:[#allocation8 + $0x1a0] sm:$0xff]
        %v1316 = vld [vmem:[#allocation8 + $0x1b0] sm:$0xff]
        %v1317 = vld [vmem:[#allocation8 + $0x1c0] sm:$0xff]
        %v1318 = vld [vmem:[#allocation8 + $0x1d0] sm:$0xff]
        %v1319 = vld [vmem:[#allocation8 + $0x1e0] sm:$0xff]
        %v1320 = vld [vmem:[#allocation8 + $0x1f0] sm:$0xff]
        %v1321 = vld [vmem:[#allocation8 + $0x200] sm:$0xff]
        %v1322 = vld [vmem:[#allocation8 + $0x210] sm:$0xff]
        %v1323 = vld [vmem:[#allocation8 + $0x220] sm:$0xff]
        %v1324 = vld [vmem:[#allocation8 + $0x230] sm:$0xff]
        %v1325 = vld [vmem:[#allocation8 + $0x240] sm:$0xff]
        %v1326 = vld [vmem:[#allocation8 + $0x250] sm:$0xff]
        %v1327 = vld [vmem:[#allocation8 + $0x260] sm:$0xff]
        %v1328 = vld [vmem:[#allocation8 + $0x270] sm:$0xff]
        %v1329 = vld [vmem:[#allocation8 + $0x280] sm:$0xff]
        %v1330 = vld [vmem:[#allocation8 + $0x290] sm:$0xff]
        %v1331 = vld [vmem:[#allocation8 + $0x2a0] sm:$0xff]
        %v1332 = vld [vmem:[#allocation8 + $0x2b0] sm:$0xff]
        %v1333 = vld [vmem:[#allocation8 + $0x2c0] sm:$0xff]
        %v1334 = vld [vmem:[#allocation8 + $0x2d0] sm:$0xff]
        %v1335 = vld [vmem:[#allocation8 + $0x2e0] sm:$0xff]
        %v1336 = vld [vmem:[#allocation8 + $0x2f0] sm:$0xff]
        %v1337 = vld [vmem:[#allocation8 + $0x300] sm:$0xff]
        %v1338 = vld [vmem:[#allocation8 + $0x310] sm:$0xff]
        %v1339 = vld [vmem:[#allocation8 + $0x320] sm:$0xff]
        %v1340 = vld [vmem:[#allocation8 + $0x330] sm:$0xff]
        %v1341 = vld [vmem:[#allocation8 + $0x340] sm:$0xff]
        %v1342 = vld [vmem:[#allocation8 + $0x350] sm:$0xff]
        %v1343 = vld [vmem:[#allocation8 + $0x360] sm:$0xff]
        %v1344 = vld [vmem:[#allocation8 + $0x370] sm:$0xff]
        %v1345 = vld [vmem:[#allocation8 + $0x380] sm:$0xff]
        %v1346 = vld [vmem:[#allocation8 + $0x390] sm:$0xff]
        %v1347 = vld [vmem:[#allocation8 + $0x3a0] sm:$0xff]
        %v1348 = vld [vmem:[#allocation8 + $0x3b0] sm:$0xff]
        %v1349 = vld [vmem:[#allocation8 + $0x3c0] sm:$0xff]
        %v1350 = vld [vmem:[#allocation8 + $0x3d0] sm:$0xff]
        %v1351 = vld [vmem:[#allocation8 + $0x3e0] sm:$0xff]
        %v1352 = vld [vmem:[#allocation8 + $0x3f0] sm:$0xff]
        %v1385 = vunpack.c.l.b16 %v1257
        %v1386 = vunpack.c.h.b16 %v1257
        %v1387 = vunpack.c.l.b16 %v1258
        %v1388 = vunpack.c.h.b16 %v1258
        %v1389 = vunpack.c.l.b16 %v1259
        %v1390 = vunpack.c.h.b16 %v1259
        %v1391 = vunpack.c.l.b16 %v1260
        %v1392 = vunpack.c.h.b16 %v1260
        %v1393 = vunpack.c.l.b16 %v1261
        %v1394 = vunpack.c.h.b16 %v1261
        %v1395 = vunpack.c.l.b16 %v1262
        %v1396 = vunpack.c.h.b16 %v1262
        %v1397 = vunpack.c.l.b16 %v1263
        %v1398 = vunpack.c.h.b16 %v1263
        %v1399 = vunpack.c.l.b16 %v1264
        %v1400 = vunpack.c.h.b16 %v1264
        %v1401 = vunpack.c.l.b16 %v1265
        %v1402 = vunpack.c.h.b16 %v1265
        %v1403 = vunpack.c.l.b16 %v1266
        %v1404 = vunpack.c.h.b16 %v1266
        %v1405 = vunpack.c.l.b16 %v1267
        %v1406 = vunpack.c.h.b16 %v1267
        %v1407 = vunpack.c.l.b16 %v1268
        %v1408 = vunpack.c.h.b16 %v1268
        %v1409 = vunpack.c.l.b16 %v1269
        %v1410 = vunpack.c.h.b16 %v1269
        %v1411 = vunpack.c.l.b16 %v1270
        %v1412 = vunpack.c.h.b16 %v1270
        %v1413 = vunpack.c.l.b16 %v1271
        %v1414 = vunpack.c.h.b16 %v1271
        %v1415 = vunpack.c.l.b16 %v1272
        %v1416 = vunpack.c.h.b16 %v1272
        %v1417 = vunpack.c.l.b16 %v1273
        %v1418 = vunpack.c.h.b16 %v1273
        %v1419 = vunpack.c.l.b16 %v1274
        %v1420 = vunpack.c.h.b16 %v1274
        %v1421 = vunpack.c.l.b16 %v1275
        %v1422 = vunpack.c.h.b16 %v1275
        %v1423 = vunpack.c.l.b16 %v1276
        %v1424 = vunpack.c.h.b16 %v1276
        %v1425 = vunpack.c.l.b16 %v1277
        %v1426 = vunpack.c.h.b16 %v1277
        %v1427 = vunpack.c.l.b16 %v1278
        %v1428 = vunpack.c.h.b16 %v1278
        %v1429 = vunpack.c.l.b16 %v1279
        %v1430 = vunpack.c.h.b16 %v1279
        %v1431 = vunpack.c.l.b16 %v1280
        %v1432 = vunpack.c.h.b16 %v1280
        %v1433 = vunpack.c.l.b16 %v1281
        %v1434 = vunpack.c.h.b16 %v1281
        %v1435 = vunpack.c.l.b16 %v1282
        %v1436 = vunpack.c.h.b16 %v1282
        %v1437 = vunpack.c.l.b16 %v1283
        %v1438 = vunpack.c.h.b16 %v1283
        %v1439 = vunpack.c.l.b16 %v1284
        %v1440 = vunpack.c.h.b16 %v1284
        %v1441 = vunpack.c.l.b16 %v1285
        %v1442 = vunpack.c.h.b16 %v1285
        %v1443 = vunpack.c.l.b16 %v1286
        %v1444 = vunpack.c.h.b16 %v1286
        %v1445 = vunpack.c.l.b16 %v1287
        %v1446 = vunpack.c.h.b16 %v1287
        %v1447 = vunpack.c.l.b16 %v1288
        %v1448 = vunpack.c.h.b16 %v1288
        %v1449 = vpack.c.b16 %v1389, %v1385
        %v1450 = vpack.c.b16 %v1390, %v1386
        %v1451 = vpack.c.b16 %v1391, %v1387
        %v1452 = vpack.c.b16 %v1392, %v1388
        %v1453 = vpack.c.b16 %v1397, %v1393
        %v1454 = vpack.c.b16 %v1398, %v1394
        %v1455 = vpack.c.b16 %v1399, %v1395
        %v1456 = vpack.c.b16 %v1400, %v1396
        %v1457 = vpack.c.b16 %v1405, %v1401
        %v1458 = vpack.c.b16 %v1406, %v1402
        %v1459 = vpack.c.b16 %v1407, %v1403
        %v1460 = vpack.c.b16 %v1408, %v1404
        %v1461 = vpack.c.b16 %v1413, %v1409
        %v1462 = vpack.c.b16 %v1414, %v1410
        %v1463 = vpack.c.b16 %v1415, %v1411
        %v1464 = vpack.c.b16 %v1416, %v1412
        %v1465 = vpack.c.b16 %v1421, %v1417
        %v1466 = vpack.c.b16 %v1422, %v1418
        %v1467 = vpack.c.b16 %v1423, %v1419
        %v1468 = vpack.c.b16 %v1424, %v1420
        %v1469 = vpack.c.b16 %v1429, %v1425
        %v1470 = vpack.c.b16 %v1430, %v1426
        %v1471 = vpack.c.b16 %v1431, %v1427
        %v1472 = vpack.c.b16 %v1432, %v1428
        %v1473 = vpack.c.b16 %v1437, %v1433
        %v1474 = vpack.c.b16 %v1438, %v1434
        %v1475 = vpack.c.b16 %v1439, %v1435
        %v1476 = vpack.c.b16 %v1440, %v1436
        %v1477 = vpack.c.b16 %v1445, %v1441
        %v1478 = vpack.c.b16 %v1446, %v1442
        %v1479 = vpack.c.b16 %v1447, %v1443
        %v1480 = vpack.c.b16 %v1448, %v1444
        %v1577 = vunpack.c.l.b16 %v1289
        %v1578 = vunpack.c.h.b16 %v1289
        %v1579 = vunpack.c.l.b16 %v1290
        %v1580 = vunpack.c.h.b16 %v1290
        %v1581 = vunpack.c.l.b16 %v1291
        %v1582 = vunpack.c.h.b16 %v1291
        %v1583 = vunpack.c.l.b16 %v1292
        %v1584 = vunpack.c.h.b16 %v1292
        %v1585 = vunpack.c.l.b16 %v1293
        %v1586 = vunpack.c.h.b16 %v1293
        %v1587 = vunpack.c.l.b16 %v1294
        %v1588 = vunpack.c.h.b16 %v1294
        %v1589 = vunpack.c.l.b16 %v1295
        %v1590 = vunpack.c.h.b16 %v1295
        %v1591 = vunpack.c.l.b16 %v1296
        %v1592 = vunpack.c.h.b16 %v1296
        %v1593 = vunpack.c.l.b16 %v1297
        %v1594 = vunpack.c.h.b16 %v1297
        %v1595 = vunpack.c.l.b16 %v1298
        %v1596 = vunpack.c.h.b16 %v1298
        %v1597 = vunpack.c.l.b16 %v1299
        %v1598 = vunpack.c.h.b16 %v1299
        %v1599 = vunpack.c.l.b16 %v1300
        %v1600 = vunpack.c.h.b16 %v1300
        %v1601 = vunpack.c.l.b16 %v1301
        %v1602 = vunpack.c.h.b16 %v1301
        %v1603 = vunpack.c.l.b16 %v1302
        %v1604 = vunpack.c.h.b16 %v1302
        %v1605 = vunpack.c.l.b16 %v1303
        %v1606 = vunpack.c.h.b16 %v1303
        %v1607 = vunpack.c.l.b16 %v1304
        %v1608 = vunpack.c.h.b16 %v1304
        %v1609 = vunpack.c.l.b16 %v1305
        %v1610 = vunpack.c.h.b16 %v1305
        %v1611 = vunpack.c.l.b16 %v1306
        %v1612 = vunpack.c.h.b16 %v1306
        %v1613 = vunpack.c.l.b16 %v1307
        %v1614 = vunpack.c.h.b16 %v1307
        %v1615 = vunpack.c.l.b16 %v1308
        %v1616 = vunpack.c.h.b16 %v1308
        %v1617 = vunpack.c.l.b16 %v1309
        %v1618 = vunpack.c.h.b16 %v1309
        %v1619 = vunpack.c.l.b16 %v1310
        %v1620 = vunpack.c.h.b16 %v1310
        %v1621 = vunpack.c.l.b16 %v1311
        %v1622 = vunpack.c.h.b16 %v1311
        %v1623 = vunpack.c.l.b16 %v1312
        %v1624 = vunpack.c.h.b16 %v1312
        %v1625 = vunpack.c.l.b16 %v1313
        %v1626 = vunpack.c.h.b16 %v1313
        %v1627 = vunpack.c.l.b16 %v1314
        %v1628 = vunpack.c.h.b16 %v1314
        %v1629 = vunpack.c.l.b16 %v1315
        %v1630 = vunpack.c.h.b16 %v1315
        %v1631 = vunpack.c.l.b16 %v1316
        %v1632 = vunpack.c.h.b16 %v1316
        %v1633 = vunpack.c.l.b16 %v1317
        %v1634 = vunpack.c.h.b16 %v1317
        %v1635 = vunpack.c.l.b16 %v1318
        %v1636 = vunpack.c.h.b16 %v1318
        %v1637 = vunpack.c.l.b16 %v1319
        %v1638 = vunpack.c.h.b16 %v1319
        %v1639 = vunpack.c.l.b16 %v1320
        %v1640 = vunpack.c.h.b16 %v1320
        %v1641 = vunpack.c.l.b16 %v1321
        %v1642 = vunpack.c.h.b16 %v1321
        %v1643 = vunpack.c.l.b16 %v1322
        %v1644 = vunpack.c.h.b16 %v1322
        %v1645 = vunpack.c.l.b16 %v1323
        %v1646 = vunpack.c.h.b16 %v1323
        %v1647 = vunpack.c.l.b16 %v1324
        %v1648 = vunpack.c.h.b16 %v1324
        %v1649 = vunpack.c.l.b16 %v1325
        %v1650 = vunpack.c.h.b16 %v1325
        %v1651 = vunpack.c.l.b16 %v1326
        %v1652 = vunpack.c.h.b16 %v1326
        %v1653 = vunpack.c.l.b16 %v1327
        %v1654 = vunpack.c.h.b16 %v1327
        %v1655 = vunpack.c.l.b16 %v1328
        %v1656 = vunpack.c.h.b16 %v1328
        %v1657 = vunpack.c.l.b16 %v1329
        %v1658 = vunpack.c.h.b16 %v1329
        %v1659 = vunpack.c.l.b16 %v1330
        %v1660 = vunpack.c.h.b16 %v1330
        %v1661 = vunpack.c.l.b16 %v1331
        %v1662 = vunpack.c.h.b16 %v1331
        %v1663 = vunpack.c.l.b16 %v1332
        %v1664 = vunpack.c.h.b16 %v1332
        %v1665 = vunpack.c.l.b16 %v1333
        %v1666 = vunpack.c.h.b16 %v1333
        %v1667 = vunpack.c.l.b16 %v1334
        %v1668 = vunpack.c.h.b16 %v1334
        %v1669 = vunpack.c.l.b16 %v1335
        %v1670 = vunpack.c.h.b16 %v1335
        %v1671 = vunpack.c.l.b16 %v1336
        %v1672 = vunpack.c.h.b16 %v1336
        %v1673 = vunpack.c.l.b16 %v1337
        %v1674 = vunpack.c.h.b16 %v1337
        %v1675 = vunpack.c.l.b16 %v1338
        %v1676 = vunpack.c.h.b16 %v1338
        %v1677 = vunpack.c.l.b16 %v1339
        %v1678 = vunpack.c.h.b16 %v1339
        %v1679 = vunpack.c.l.b16 %v1340
        %v1680 = vunpack.c.h.b16 %v1340
        %v1681 = vunpack.c.l.b16 %v1341
        %v1682 = vunpack.c.h.b16 %v1341
        %v1683 = vunpack.c.l.b16 %v1342
        %v1684 = vunpack.c.h.b16 %v1342
        %v1685 = vunpack.c.l.b16 %v1343
        %v1686 = vunpack.c.h.b16 %v1343
        %v1687 = vunpack.c.l.b16 %v1344
        %v1688 = vunpack.c.h.b16 %v1344
        %v1689 = vunpack.c.l.b16 %v1345
        %v1690 = vunpack.c.h.b16 %v1345
        %v1691 = vunpack.c.l.b16 %v1346
        %v1692 = vunpack.c.h.b16 %v1346
        %v1693 = vunpack.c.l.b16 %v1347
        %v1694 = vunpack.c.h.b16 %v1347
        %v1695 = vunpack.c.l.b16 %v1348
        %v1696 = vunpack.c.h.b16 %v1348
        %v1697 = vunpack.c.l.b16 %v1349
        %v1698 = vunpack.c.h.b16 %v1349
        %v1699 = vunpack.c.l.b16 %v1350
        %v1700 = vunpack.c.h.b16 %v1350
        %v1701 = vunpack.c.l.b16 %v1351
        %v1702 = vunpack.c.h.b16 %v1351
        %v1703 = vunpack.c.l.b16 %v1352
        %v1704 = vunpack.c.h.b16 %v1352
        %v1705 = vpack.c.b16 %v1579, %v1577
        %v1706 = vpack.c.b16 %v1580, %v1578
        %v1707 = vpack.c.b16 %v1583, %v1581
        %v1708 = vpack.c.b16 %v1584, %v1582
        %v1709 = vpack.c.b16 %v1587, %v1585
        %v1710 = vpack.c.b16 %v1588, %v1586
        %v1711 = vpack.c.b16 %v1591, %v1589
        %v1712 = vpack.c.b16 %v1592, %v1590
        %v1713 = vpack.c.b16 %v1595, %v1593
        %v1714 = vpack.c.b16 %v1596, %v1594
        %v1715 = vpack.c.b16 %v1599, %v1597
        %v1716 = vpack.c.b16 %v1600, %v1598
        %v1717 = vpack.c.b16 %v1603, %v1601
        %v1718 = vpack.c.b16 %v1604, %v1602
        %v1719 = vpack.c.b16 %v1607, %v1605
        %v1720 = vpack.c.b16 %v1608, %v1606
        %v1721 = vpack.c.b16 %v1611, %v1609
        %v1722 = vpack.c.b16 %v1612, %v1610
        %v1723 = vpack.c.b16 %v1615, %v1613
        %v1724 = vpack.c.b16 %v1616, %v1614
        %v1725 = vpack.c.b16 %v1619, %v1617
        %v1726 = vpack.c.b16 %v1620, %v1618
        %v1727 = vpack.c.b16 %v1623, %v1621
        %v1728 = vpack.c.b16 %v1624, %v1622
        %v1729 = vpack.c.b16 %v1627, %v1625
        %v1730 = vpack.c.b16 %v1628, %v1626
        %v1731 = vpack.c.b16 %v1631, %v1629
        %v1732 = vpack.c.b16 %v1632, %v1630
        %v1733 = vpack.c.b16 %v1635, %v1633
        %v1734 = vpack.c.b16 %v1636, %v1634
        %v1735 = vpack.c.b16 %v1639, %v1637
        %v1736 = vpack.c.b16 %v1640, %v1638
        %v1737 = vpack.c.b16 %v1643, %v1641
        %v1738 = vpack.c.b16 %v1644, %v1642
        %v1739 = vpack.c.b16 %v1647, %v1645
        %v1740 = vpack.c.b16 %v1648, %v1646
        %v1741 = vpack.c.b16 %v1651, %v1649
        %v1742 = vpack.c.b16 %v1652, %v1650
        %v1743 = vpack.c.b16 %v1655, %v1653
        %v1744 = vpack.c.b16 %v1656, %v1654
        %v1745 = vpack.c.b16 %v1659, %v1657
        %v1746 = vpack.c.b16 %v1660, %v1658
        %v1747 = vpack.c.b16 %v1663, %v1661
        %v1748 = vpack.c.b16 %v1664, %v1662
        %v1749 = vpack.c.b16 %v1667, %v1665
        %v1750 = vpack.c.b16 %v1668, %v1666
        %v1751 = vpack.c.b16 %v1671, %v1669
        %v1752 = vpack.c.b16 %v1672, %v1670
        %v1753 = vpack.c.b16 %v1675, %v1673
        %v1754 = vpack.c.b16 %v1676, %v1674
        %v1755 = vpack.c.b16 %v1679, %v1677
        %v1756 = vpack.c.b16 %v1680, %v1678
        %v1757 = vpack.c.b16 %v1683, %v1681
        %v1758 = vpack.c.b16 %v1684, %v1682
        %v1759 = vpack.c.b16 %v1687, %v1685
        %v1760 = vpack.c.b16 %v1688, %v1686
        %v1761 = vpack.c.b16 %v1691, %v1689
        %v1762 = vpack.c.b16 %v1692, %v1690
        %v1763 = vpack.c.b16 %v1695, %v1693
        %v1764 = vpack.c.b16 %v1696, %v1694
        %v1765 = vpack.c.b16 %v1699, %v1697
        %v1766 = vpack.c.b16 %v1700, %v1698
        %v1767 = vpack.c.b16 %v1703, %v1701
        %v1768 = vpack.c.b16 %v1704, %v1702
        %1833 = vmatprep.subr.bf16.mxu0 %v1706
        %1834 = vmatpush1.bf16.msra.mxu0 %v1705
        %1835 = vmatprep.subr.bf16.mxu0 %v1708
        %1836 = vmatpush1.bf16.msra.mxu0 %v1707
        %1837 = vmatprep.subr.bf16.mxu0 %v1710
        %1838 = vmatpush1.bf16.msra.mxu0 %v1709
        %1839 = vmatprep.subr.bf16.mxu0 %v1712
        %1840 = vmatpush1.bf16.msra.mxu0 %v1711
        %1841 = vmatprep.subr.bf16.mxu0 %v1714
        %1842 = vmatpush1.bf16.msra.mxu0 %v1713
        %1843 = vmatprep.subr.bf16.mxu0 %v1716
        %1844 = vmatpush1.bf16.msra.mxu0 %v1715
        %1845 = vmatprep.subr.bf16.mxu0 %v1718
        %1846 = vmatpush1.bf16.msra.mxu0 %v1717
        %1847 = vmatprep.subr.bf16.mxu0 %v1720
        %1848 = vmatpush1.bf16.msra.mxu0 %v1719
        %1849 = vmatprep.subr.bf16.mxu0 %v1722
        %1850 = vmatpush1.bf16.msra.mxu0 %v1721
        %1851 = vmatprep.subr.bf16.mxu0 %v1724
        %1852 = vmatpush1.bf16.msra.mxu0 %v1723
        %1853 = vmatprep.subr.bf16.mxu0 %v1726
        %1854 = vmatpush1.bf16.msra.mxu0 %v1725
        %1855 = vmatprep.subr.bf16.mxu0 %v1728
        %1856 = vmatpush1.bf16.msra.mxu0 %v1727
        %1857 = vmatprep.subr.bf16.mxu0 %v1730
        %1858 = vmatpush1.bf16.msra.mxu0 %v1729
        %1859 = vmatprep.subr.bf16.mxu0 %v1732
        %1860 = vmatpush1.bf16.msra.mxu0 %v1731
        %1861 = vmatprep.subr.bf16.mxu0 %v1734
        %1862 = vmatpush1.bf16.msra.mxu0 %v1733
        %1863 = vmatprep.subr.bf16.mxu0 %v1736
        %1864 = vmatpush1.bf16.msra.mxu0 %v1735
        %1865 = vmatprep.mubr.bf16.mxu0 %v1450
        %1866 = vmatmul.mubr.bf16.gmra.mrb[0].mxu0 %v1449
        %v1867 = vpop.f32.mrb[0].mxu0
        %v1868 = vadd.f32 %v1200, %v1867
        %v1869 = vpop.f32.mrb[0].mxu0
        %v1870 = vadd.f32 %v1201, %v1869
        %v1871 = vpop.f32.mrb[0].mxu0
        %v1872 = vadd.f32 %v1202, %v1871
        %v1873 = vpop.f32.mrb[0].mxu0
        %v1874 = vadd.f32 %v1203, %v1873
        %1875 = vmatprep.mubr.bf16.mxu0 %v1454
        %1876 = vmatmul.mubr.bf16.gmra.mrb[0].mxu0 %v1453
        %v1877 = vpop.f32.mrb[0].mxu0
        %v1878 = vadd.f32 %v1204, %v1877
        %v1879 = vpop.f32.mrb[0].mxu0
        %v1880 = vadd.f32 %v1205, %v1879
        %v1881 = vpop.f32.mrb[0].mxu0
        %v1882 = vadd.f32 %v1206, %v1881
        %v1883 = vpop.f32.mrb[0].mxu0
        %v1884 = vadd.f32 %v1207, %v1883
        %1885 = vmatprep.mubr.bf16.mxu0 %v1458
        %1886 = vmatmul.mubr.bf16.gmra.mrb[0].mxu0 %v1457
        %v1887 = vpop.f32.mrb[0].mxu0
        %v1888 = vadd.f32 %v1208, %v1887
        %v1889 = vpop.f32.mrb[0].mxu0
        %v1890 = vadd.f32 %v1209, %v1889
        %v1891 = vpop.f32.mrb[0].mxu0
        %v1892 = vadd.f32 %v1210, %v1891
        %v1893 = vpop.f32.mrb[0].mxu0
        %v1894 = vadd.f32 %v1211, %v1893
        %1895 = vmatprep.mubr.bf16.mxu0 %v1462
        %1896 = vmatmul.mubr.bf16.gmra.mrb[0].mxu0 %v1461
        %v1897 = vpop.f32.mrb[0].mxu0
        %v1898 = vadd.f32 %v1212, %v1897
        %v1899 = vpop.f32.mrb[0].mxu0
        %v1900 = vadd.f32 %v1213, %v1899
        %v1901 = vpop.f32.mrb[0].mxu0
        %v1902 = vadd.f32 %v1214, %v1901
        %v1903 = vpop.f32.mrb[0].mxu0
        %v1904 = vadd.f32 %v1215, %v1903
        %1905 = vmatprep.mubr.bf16.mxu0 %v1466
        %1906 = vmatmul.mubr.bf16.gmra.mrb[0].mxu0 %v1465
        %v1907 = vpop.f32.mrb[0].mxu0
        %v1908 = vadd.f32 %v1216, %v1907
        %v1909 = vpop.f32.mrb[0].mxu0
        %v1910 = vadd.f32 %v1217, %v1909
        %v1911 = vpop.f32.mrb[0].mxu0
        %v1912 = vadd.f32 %v1218, %v1911
        %v1913 = vpop.f32.mrb[0].mxu0
        %v1914 = vadd.f32 %v1219, %v1913
        %1915 = vmatprep.mubr.bf16.mxu0 %v1470
        %1916 = vmatmul.mubr.bf16.gmra.mrb[0].mxu0 %v1469
        %v1917 = vpop.f32.mrb[0].mxu0
        %v1918 = vadd.f32 %v1220, %v1917
        %v1919 = vpop.f32.mrb[0].mxu0
        %v1920 = vadd.f32 %v1221, %v1919
        %v1921 = vpop.f32.mrb[0].mxu0
        %v1922 = vadd.f32 %v1222, %v1921
        %v1923 = vpop.f32.mrb[0].mxu0
        %v1924 = vadd.f32 %v1223, %v1923
        %1925 = vmatprep.mubr.bf16.mxu0 %v1474
        %1926 = vmatmul.mubr.bf16.gmra.mrb[0].mxu0 %v1473
        %v1927 = vpop.f32.mrb[0].mxu0
        %v1928 = vadd.f32 %v1224, %v1927
        %v1929 = vpop.f32.mrb[0].mxu0
        %v1930 = vadd.f32 %v1225, %v1929
        %v1931 = vpop.f32.mrb[0].mxu0
        %v1932 = vadd.f32 %v1226, %v1931
        %v1933 = vpop.f32.mrb[0].mxu0
        %v1934 = vadd.f32 %v1227, %v1933
        %1935 = vmatprep.mubr.bf16.mxu0 %v1478
        %1936 = vmatmul.mubr.bf16.gmra.mrb[0].mxu0 %v1477
        %v1937 = vpop.f32.mrb[0].mxu0
        %v1938 = vadd.f32 %v1228, %v1937
        %v1939 = vpop.f32.mrb[0].mxu0
        %v1940 = vadd.f32 %v1229, %v1939
        %v1941 = vpop.f32.mrb[0].mxu0
        %v1942 = vadd.f32 %v1230, %v1941
        %v1943 = vpop.f32.mrb[0].mxu0
        %v1944 = vadd.f32 %v1231, %v1943
        %1945 = vdwg.mxu0
        %1946 = vmatprep.subr.bf16.mxu0 %v1738
        %1947 = vmatpush1.bf16.msra.mxu0 %v1737
        %1948 = vmatprep.subr.bf16.mxu0 %v1740
        %1949 = vmatpush1.bf16.msra.mxu0 %v1739
        %1950 = vmatprep.subr.bf16.mxu0 %v1742
        %1951 = vmatpush1.bf16.msra.mxu0 %v1741
        %1952 = vmatprep.subr.bf16.mxu0 %v1744
        %1953 = vmatpush1.bf16.msra.mxu0 %v1743
        %1954 = vmatprep.subr.bf16.mxu0 %v1746
        %1955 = vmatpush1.bf16.msra.mxu0 %v1745
        %1956 = vmatprep.subr.bf16.mxu0 %v1748
        %1957 = vmatpush1.bf16.msra.mxu0 %v1747
        %1958 = vmatprep.subr.bf16.mxu0 %v1750
        %1959 = vmatpush1.bf16.msra.mxu0 %v1749
        %1960 = vmatprep.subr.bf16.mxu0 %v1752
        %1961 = vmatpush1.bf16.msra.mxu0 %v1751
        %1962 = vmatprep.subr.bf16.mxu0 %v1754
        %1963 = vmatpush1.bf16.msra.mxu0 %v1753
        %1964 = vmatprep.subr.bf16.mxu0 %v1756
        %1965 = vmatpush1.bf16.msra.mxu0 %v1755
        %1966 = vmatprep.subr.bf16.mxu0 %v1758
        %1967 = vmatpush1.bf16.msra.mxu0 %v1757
        %1968 = vmatprep.subr.bf16.mxu0 %v1760
        %1969 = vmatpush1.bf16.msra.mxu0 %v1759
        %1970 = vmatprep.subr.bf16.mxu0 %v1762
        %1971 = vmatpush1.bf16.msra.mxu0 %v1761
        %1972 = vmatprep.subr.bf16.mxu0 %v1764
        %1973 = vmatpush1.bf16.msra.mxu0 %v1763
        %1974 = vmatprep.subr.bf16.mxu0 %v1766
        %1975 = vmatpush1.bf16.msra.mxu0 %v1765
        %1976 = vmatprep.subr.bf16.mxu0 %v1768
        %1977 = vmatpush1.bf16.msra.mxu0 %v1767
        %1978 = vmatprep.mubr.bf16.mxu0 %v1452
        %1979 = vmatmul.mubr.bf16.gmra.mrb[0].mxu0 %v1451
        %v1980 = vpop.f32.mrb[0].mxu0
        %v1981 = vadd.f32 %v1868, %v1980
        %v1982 = vpop.f32.mrb[0].mxu0
        %v1983 = vadd.f32 %v1870, %v1982
        %v1984 = vpop.f32.mrb[0].mxu0
        %v1985 = vadd.f32 %v1872, %v1984
        %v1986 = vpop.f32.mrb[0].mxu0
        %v1987 = vadd.f32 %v1874, %v1986
        %1988 = vmatprep.mubr.bf16.mxu0 %v1456
        %1989 = vmatmul.mubr.bf16.gmra.mrb[0].mxu0 %v1455
        %v1990 = vpop.f32.mrb[0].mxu0
        %v1991 = vadd.f32 %v1878, %v1990
        %v1992 = vpop.f32.mrb[0].mxu0
        %v1993 = vadd.f32 %v1880, %v1992
        %v1994 = vpop.f32.mrb[0].mxu0
        %v1995 = vadd.f32 %v1882, %v1994
        %v1996 = vpop.f32.mrb[0].mxu0
        %v1997 = vadd.f32 %v1884, %v1996
        %1998 = vmatprep.mubr.bf16.mxu0 %v1460
        %1999 = vmatmul.mubr.bf16.gmra.mrb[0].mxu0 %v1459
        %v2000 = vpop.f32.mrb[0].mxu0
        %v2001 = vadd.f32 %v1888, %v2000
        %v2002 = vpop.f32.mrb[0].mxu0
        %v2003 = vadd.f32 %v1890, %v2002
        %v2004 = vpop.f32.mrb[0].mxu0
        %v2005 = vadd.f32 %v1892, %v2004
        %v2006 = vpop.f32.mrb[0].mxu0
        %v2007 = vadd.f32 %v1894, %v2006
        %2008 = vmatprep.mubr.bf16.mxu0 %v1464
        %2009 = vmatmul.mubr.bf16.gmra.mrb[0].mxu0 %v1463
        %v2010 = vpop.f32.mrb[0].mxu0
        %v2011 = vadd.f32 %v1898, %v2010
        %v2012 = vpop.f32.mrb[0].mxu0
        %v2013 = vadd.f32 %v1900, %v2012
        %v2014 = vpop.f32.mrb[0].mxu0
        %v2015 = vadd.f32 %v1902, %v2014
        %v2016 = vpop.f32.mrb[0].mxu0
        %v2017 = vadd.f32 %v1904, %v2016
        %2018 = vmatprep.mubr.bf16.mxu0 %v1468
        %2019 = vmatmul.mubr.bf16.gmra.mrb[0].mxu0 %v1467
        %v2020 = vpop.f32.mrb[0].mxu0
        %v2021 = vadd.f32 %v1908, %v2020
        %v2022 = vpop.f32.mrb[0].mxu0
        %v2023 = vadd.f32 %v1910, %v2022
        %v2024 = vpop.f32.mrb[0].mxu0
        %v2025 = vadd.f32 %v1912, %v2024
        %v2026 = vpop.f32.mrb[0].mxu0
        %v2027 = vadd.f32 %v1914, %v2026
        %2028 = vmatprep.mubr.bf16.mxu0 %v1472
        %2029 = vmatmul.mubr.bf16.gmra.mrb[0].mxu0 %v1471
        %v2030 = vpop.f32.mrb[0].mxu0
        %v2031 = vadd.f32 %v1918, %v2030
        %v2032 = vpop.f32.mrb[0].mxu0
        %v2033 = vadd.f32 %v1920, %v2032
        %v2034 = vpop.f32.mrb[0].mxu0
        %v2035 = vadd.f32 %v1922, %v2034
        %v2036 = vpop.f32.mrb[0].mxu0
        %v2037 = vadd.f32 %v1924, %v2036
        %2038 = vmatprep.mubr.bf16.mxu0 %v1476
        %2039 = vmatmul.mubr.bf16.gmra.mrb[0].mxu0 %v1475
        %v2040 = vpop.f32.mrb[0].mxu0
        %v2041 = vadd.f32 %v1928, %v2040
        %v2042 = vpop.f32.mrb[0].mxu0
        %v2043 = vadd.f32 %v1930, %v2042
        %v2044 = vpop.f32.mrb[0].mxu0
        %v2045 = vadd.f32 %v1932, %v2044
        %v2046 = vpop.f32.mrb[0].mxu0
        %v2047 = vadd.f32 %v1934, %v2046
        %2048 = vmatprep.mubr.bf16.mxu0 %v1480
        %2049 = vmatmul.mubr.bf16.gmra.mrb[0].mxu0 %v1479
        %v2050 = vpop.f32.mrb[0].mxu0
        %v2051 = vadd.f32 %v1938, %v2050
        %v2052 = vpop.f32.mrb[0].mxu0
        %v2053 = vadd.f32 %v1940, %v2052
        %v2054 = vpop.f32.mrb[0].mxu0
        %v2055 = vadd.f32 %v1942, %v2054
        %v2056 = vpop.f32.mrb[0].mxu0
        %v2057 = vadd.f32 %v1944, %v2056
        %2058 = vdwg.mxu0
        %2059 = vst [vmem:[%s271] sm:$0xff] %v1981
        %2060 = vst [vmem:[%s271 + $0x8] sm:$0xff] %v1983
        %2061 = vst [vmem:[%s271 + $0x10] sm:$0xff] %v1985
        %2062 = vst [vmem:[%s271 + $0x18] sm:$0xff] %v1987
        %2063 = vst [vmem:[%s271 + $0x20] sm:$0xff] %v1991
        %2064 = vst [vmem:[%s271 + $0x28] sm:$0xff] %v1993
        %2065 = vst [vmem:[%s271 + $0x30] sm:$0xff] %v1995
        %2066 = vst [vmem:[%s271 + $0x38] sm:$0xff] %v1997
        %2067 = vst [vmem:[%s271 + $0x40] sm:$0xff] %v2001
        %2068 = vst [vmem:[%s271 + $0x48] sm:$0xff] %v2003
        %2069 = vst [vmem:[%s271 + $0x50] sm:$0xff] %v2005
        %2070 = vst [vmem:[%s271 + $0x58] sm:$0xff] %v2007
        %2071 = vst [vmem:[%s271 + $0x60] sm:$0xff] %v2011
        %2072 = vst [vmem:[%s271 + $0x68] sm:$0xff] %v2013
        %2073 = vst [vmem:[%s271 + $0x70] sm:$0xff] %v2015
        %2074 = vst [vmem:[%s271 + $0x78] sm:$0xff] %v2017
        %2075 = vst [vmem:[%s271 + $0x80] sm:$0xff] %v2021
        %2076 = vst [vmem:[%s271 + $0x88] sm:$0xff] %v2023
        %2077 = vst [vmem:[%s271 + $0x90] sm:$0xff] %v2025
        %2078 = vst [vmem:[%s271 + $0x98] sm:$0xff] %v2027
        %2079 = vst [vmem:[%s271 + $0xa0] sm:$0xff] %v2031
        %2080 = vst [vmem:[%s271 + $0xa8] sm:$0xff] %v2033
        %2081 = vst [vmem:[%s271 + $0xb0] sm:$0xff] %v2035
        %2082 = vst [vmem:[%s271 + $0xb8] sm:$0xff] %v2037
        %2083 = vst [vmem:[%s271 + $0xc0] sm:$0xff] %v2041
        %2084 = vst [vmem:[%s271 + $0xc8] sm:$0xff] %v2043
        %2085 = vst [vmem:[%s271 + $0xd0] sm:$0xff] %v2045
        %2086 = vst [vmem:[%s271 + $0xd8] sm:$0xff] %v2047
        %2087 = vst [vmem:[%s271 + $0xe0] sm:$0xff] %v2051
        %2088 = vst [vmem:[%s271 + $0xe8] sm:$0xff] %v2053
        %2089 = vst [vmem:[%s271 + $0xf0] sm:$0xff] %v2055
        %2090 = vst [vmem:[%s271 + $0xf8] sm:$0xff] %v2057
        %s2091 = sand.u32 %s131, 1
        %s2092 = scalar_lea.sflag [#allocation5], %s2091
        %s2093 = sand.u32 %s131, 1
        %s2094 = smul.addr %s2093, 256
        %s2095 = scalar_lea.vmem [#allocation9], %s2094
        // Predicated region
        $region49: #{tpu_custom_call.1} parent=31 // pred_check
          %p2096 = pneg %p141
        $region50: #{tpu_custom_call.1} parent=31 // pred_check_branch
          %2098 = sbr.rel (%p2096) target = $region52
        $region51: #{tpu_custom_call.1} parent=31 // pred_region
          %s2099 = sadd.s32 %s29, %s30
          %s2100 = smul.u32 16, %s2099
          %s2102 = ssub.s32 4096, 4096
          %2103 = vsyncadd %s2092, %s2102
          %s2104 = smul.addr %s2100, 2
          %s2105 = smul.addr %s28, 32
          %s2106 = sadd.s32 %s2104, %s2105
          %s2107 = smul.addr %s2106, 128
          %s2108 = scalar_lea.hbm %s3, %s2107
          %s2109 = sshll.u32 %s2095, 4
          %s2110 = int_to_ptr.vmem [resolvable:$true] %s2109
          %2115 = dma.vmem_to_hbm [thread:$0]  %s2110, 4096, %s2108, %s2092, 256, 256, 16
        $region52: #{tpu_custom_call.1} parent=31 // pred_fallthru
          _
      $region32: #{tpu_custom_call.1} parent=5 // pred_fallthru
        _
      %p2116 = scmp.le.s32.totalorder 2, %s18
      // Predicated region
      $region53: #{tpu_custom_call.1} parent=5 // pred_check
        %p2117 = pneg %p2116
      $region54: #{tpu_custom_call.1} parent=5 // pred_check_branch
        %2119 = sbr.rel (%p2117) target = $region56
      $region55: #{tpu_custom_call.1} parent=5 // pred_region
        %s2120 = ssub.s32 %s18, 2
        // Predicated region
        $region57: #{tpu_custom_call.1} parent=55 // pred_check
          %p2121 = pneg %p147
        $region58: #{tpu_custom_call.1} parent=55 // pred_check_branch
          %2123 = sbr.rel (%p2121) target = $region60
        $region59: #{tpu_custom_call.1} parent=55 // pred_region
          %s2124 = sand.u32 %s132, 1
          %s2125 = scalar_lea.sflag [#allocation5], %s2124
          %s2126 = sand.u32 %s132, 1
          %s2127 = smul.addr %s2126, 256
          %s2128 = scalar_lea.vmem [#allocation9], %s2127
          %2129 = dma.done %s2125, 4096
        $region60: #{tpu_custom_call.1} parent=55 // pred_fallthru
          _
      $region56: #{tpu_custom_call.1} parent=5 // pred_fallthru
        _
    $region6: #{tpu_custom_call.1} parent=1 // loop_footer
      %s22 = sadd.s32 1, %s18
    $region7: #{tpu_custom_call.1} parent=1 // loop_footer_branch
      %17 = sbr.rel target = $region3
    $region8: #{tpu_custom_call.1} parent=1 // loop_exit
      _
    %2130 = vsyncpa [#allocation4], 1
    %s2131 = scalar_lea.sflag [#allocation4], 1
    %2132 = vsyncpa %s2131, 1
    %2133 = vsyncpa [#allocation7], 1
    %s2134 = scalar_lea.sflag [#allocation7], 1
    %2135 = vsyncpa %s2134, 1
    %2136 = vsyncpa [#allocation5], 1
    %s2137 = scalar_lea.sflag [#allocation5], 1
    %2138 = vsyncpa %s2137, 1

</llo_original>
